<compile_context>
chip_gen: v5e
topology: v5e:2x2
jax: 0.10.0
libtpu: 0.0.40
codegen_flags: <defaults>
</compile_context>

<pallas_src>
import jax
import jax.numpy as jnp
from jax import lax
from jax.experimental import pallas as pl
from jax.experimental.pallas import tpu as pltpu

EMBED_DIM = 300
MAXLEN = 20


def embed_kernel(idx_ref, tab_ref, out_ref):
    # idx_ref: (tile_b*L, 1)  int32 in VMEM (token ids, one per output row)
    # tab_ref: (V1, D)        f32  in VMEM (full embedding table, constant block)
    # out_ref: (tile_b*L, D)  f32  (dense output slab)
    n, _ = out_ref.shape
    v1 = tab_ref.shape[0]

    # One-hot row selector on the VPU: (n, V1). Out-of-range ids (there are
    # none for valid inputs) produce an all-zero row rather than clamping.
    col_ids = lax.broadcasted_iota(jnp.int32, (n, v1), 1)
    one_hot = (col_ids == idx_ref[...]).astype(jnp.float32)

    # Single MXU matmul replaces the per-token row copies.  HIGHEST precision
    # keeps the f32 gather bit-accurate (one-hot selector, f32 accumulation).
    out_ref[...] = jnp.dot(
        one_hot,
        tab_ref[...],
        preferred_element_type=jnp.float32,
        precision=lax.Precision.HIGHEST,
    ).astype(out_ref.dtype)


def embed_layer(x_idx, table, *, tile_b=8):
    """x_idx: [B, MAXLEN] int32, table: [vocab+1, 300] f32 -> [B, MAXLEN*300] f32."""
    B, L = x_idx.shape
    V1, D = table.shape
    assert L == MAXLEN and D == EMBED_DIM
    assert B % tile_b == 0
    n = tile_b * L  # rows per grid step

    # Free host/XLA-side reshape: one index per output row, column layout so
    # the kernel can broadcast-compare it against the lane iota directly.
    idx_col = x_idx.reshape(B * L, 1).astype(jnp.int32)

    out2d = pl.pallas_call(
        embed_kernel,
        out_shape=jax.ShapeDtypeStruct((B * L, D), jnp.float32),
        grid_spec=pltpu.PrefetchScalarGridSpec(
            num_scalar_prefetch=0,
            grid=(B // tile_b,),
            in_specs=[
                # per-step index column
                pl.BlockSpec((n, 1), lambda i: (i, 0)),
                # full embedding table, constant block index -> fetched once
                # (default double-buffering costs only ~61 KB extra here; for a
                # large VMEM-resident vocab add pipeline_mode=pl.Buffered(1)).
                pl.BlockSpec((V1, D), lambda i: (0, 0)),
            ],
            out_specs=pl.BlockSpec((n, D), lambda i: (i, 0)),
        ),
        compiler_params=pltpu.CompilerParams(
            dimension_semantics=("parallel",),
        ),
        cost_estimate=pl.CostEstimate(
            flops=2 * B * L * V1 * D,
            transcendentals=0,
            bytes_accessed=B * L * D * 4 + B * L * 4 + V1 * D * 4,
        ),
    )(idx_col, table)

    # free contiguous row-major reshape: [B*20, 300] -> [B, 6000]
    # (equivalent to x.view(len(x), 6000) in the torch module)
    return out2d.reshape(B, L * D)


if __name__ == "__main__":
    key = jax.random.PRNGKey(0)
    k_tab, k_idx = jax.random.split(key)

    vocab_size = 50                      # small synthetic vocab
    B = 16                               # small batch (tile_b=8 -> 2 grid steps)

    # Deterministic parameter init (nn.Embedding-style N(0,1) weights).
    # NOTE: the original script copies an all-zeros pretrained matrix; we use
    # random weights so the kernel output is non-trivial.
    table = jax.random.normal(k_tab, (vocab_size + 1, EMBED_DIM), dtype=jnp.float32)

    # Token id inputs: [B, MAXLEN] int32 in [0, vocab_size+1)
    x_idx = jax.random.randint(k_idx, (B, MAXLEN), 0, vocab_size + 1, dtype=jnp.int32)

    out = embed_layer(x_idx, table, tile_b=8)
    out = jax.block_until_ready(out)

    # reference: plain gather + flatten
    ref = jnp.take(table, x_idx, axis=0).reshape(B, MAXLEN * EMBED_DIM)
    assert out.shape == (B, 6000)
    assert jnp.allclose(out, ref, atol=1e-5, rtol=1e-5)

    print("KERNEL_OK")
</pallas_src>

<mosaic_0001>
module attributes {stable_mosaic.version = 11 : i64} {
  func.func @embed_kernel(%arg0: i32, %arg1: memref<160x1xi32, #tpu.memory_space<vmem>>, %arg2: memref<51x300xf32, #tpu.memory_space<vmem>>, %arg3: memref<160x300xf32, #tpu.memory_space<vmem>>) attributes {dimension_semantics = [#tpu.dimension_semantics<parallel>], iteration_bounds = array<i64: 2>, scalar_prefetch = 0 : i64, scratch_operands = 0 : i64, tpu.core_type = #tpu.core_type<tc>, window_params = [{transform_indices = @transform_0, window_bounds = array<i64: 160, 1>}, {pipeline_mode = #tpu.pipeline_mode<synchronous>, transform_indices = @transform_1, window_bounds = array<i64: 51, 300>}, {transform_indices = @transform_2, window_bounds = array<i64: 160, 300>}]} {
    %0 = tpu.iota {dimensions = array<i32: 1>} : vector<160x51xi32>
    %c0 = arith.constant 0 : index
    %c0_0 = arith.constant 0 : index
    %1 = vector.load %arg1[%c0, %c0_0] : memref<160x1xi32, #tpu.memory_space<vmem>>, vector<160x1xi32>
    %2 = vector.broadcast %1 : vector<160x1xi32> to vector<160x51xi32>
    %3 = arith.cmpi eq, %0, %2 : vector<160x51xi32>
    %4 = arith.extui %3 : vector<160x51xi1> to vector<160x51xi32>
    %5 = arith.sitofp %4 : vector<160x51xi32> to vector<160x51xf32>
    %c0_1 = arith.constant 0 : index
    %c0_2 = arith.constant 0 : index
    %6 = vector.load %arg2[%c0_1, %c0_2] : memref<51x300xf32, #tpu.memory_space<vmem>>, vector<51x300xf32>
    %cst = arith.constant dense<0.000000e+00> : vector<160x300xf32>
    %7 = tpu.matmul %5, %6, %cst {dimension_numbers = #tpu.dot_dimension_numbers<[1], [0], [0], [1], [0, 0, 1, 1], [], []>, precision = #tpu.contract_precision<fp32>} : vector<160x51xf32>, vector<51x300xf32>, vector<160x300xf32> -> vector<160x300xf32>
    %c0_3 = arith.constant 0 : index
    %c0_4 = arith.constant 0 : index
    %8 = vector.load %arg3[%c0_3, %c0_4] : memref<160x300xf32, #tpu.memory_space<vmem>>, vector<160x300xf32>
    tpu.vector_store %arg3[%c0_3, %c0_4], %7 {strides = array<i32>} : memref<160x300xf32, #tpu.memory_space<vmem>>, vector<160x300xf32>,
    return
  }
  func.func @transform_0(%arg0: i32) -> (i32, i32) {
    %c0_i32 = arith.constant 0 : i32
    %c0_i32_0 = arith.constant 0 : i32
    return %arg0, %c0_i32 : i32, i32
  }
  func.func @transform_1(%arg0: i32) -> (i32, i32) {
    %c0_i32 = arith.constant 0 : i32
    %c0_i32_0 = arith.constant 0 : i32
    %c0_i32_1 = arith.constant 0 : i32
    return %c0_i32, %c0_i32_0 : i32, i32
  }
  func.func @transform_2(%arg0: i32) -> (i32, i32) {
    %c0_i32 = arith.constant 0 : i32
    %c0_i32_0 = arith.constant 0 : i32
    return %arg0, %c0_i32 : i32, i32
  }
}

</mosaic_0001>

<llo_original>
// kernel: tpu_custom_call.1
$region0: #{tpu_custom_call.1}
  #allocation0 [shape = 'u32[]', space=smem, size = 0x4, offset = 0x4, fixed_abs, tag = 'smem constant byte address 0x4 - core index']
  #allocation1 [shape = 'u32[72,128]{1,0:T(1,128)}', space=vmem, size = 0x9000, scoped, tag = 'internal scratch']
  %s0 = inlined_call_operand.vmem [shape: s32[320,1], index: 0, kind: input, shape index: {}]
  %s1 = inlined_call_operand.vmem [shape: f32[51,300], index: 1, kind: input, shape index: {}]
  %s2 = inlined_call_operand.vmem [shape: f32[320,300], index: 2, kind: output, shape index: {}]
  %s3 = sld [smem:[#allocation0]]
  $region41: #{tpu_custom_call.1} parent=0
    _
  %s5 = ssub.s32 1, %s3
  %s6 = scalar_select 0, %s5, %s3
  loop: start=0, step=1, limit=4
  $region2: #{tpu_custom_call.1} parent=0 // loop_pre_header
    _
  $region3: #{tpu_custom_call.1} parent=0 // loop_header
    %s8 = sphi 0, %s12
    %p9 = scmp.ge.s32.totalorder %s8, 4
    %s18 = sphi 0, %s20
    %s21 = sphi 0, %s18
    %s22 = sphi 0, %s21
    %s38 = sphi 0, %s22
    %s42 = sphi 0, %s42
    %s44 = sphi 0, %s42
    %s45 = sphi 0, %s44
    %s59 = sphi 0, %s45
    %s65 = sphi 0, %s67
    %s68 = sphi 0, %s65
    %s69 = sphi 0, %s68
    %s85 = sphi 0, %s69
  $region4: #{tpu_custom_call.1} parent=0 // loop_header_branch
    %11 = sbr.rel (%p9) target = $region8
  $region5: #{tpu_custom_call.1} parent=0 // loop_body
    %s13 = ssub.s32 %s8, 1
    %s14 = ssub.s32 %s8, 2
    %s15 = sadd.s32 %s8, 1
    %s16 = ssub.s32 %s8, %s15
    %p17 = scmp.eq.s32.totalorder %s16, 0
    %s19 = sadd.s32 %s18, 1
    %s20 = scalar_select %p17, %s18, %s19
    %p23 = pneg %p17
    %p24 = scmp.eq.s32.totalorder %s8, 1
    %p25 = por %p23, %p24
    %p26 = scmp.ne.s32.totalorder %s18, %s21
    %p27 = scmp.eq.s32.totalorder %s8, 0
    %p28 = por %p26, %p27
    %p29 = scmp.ne.s32.totalorder %s18, %s21
    %p30 = scmp.eq.s32.totalorder %s13, 1
    %p31 = por %p29, %p30
    %p32 = scmp.ne.s32.totalorder %s21, %s22
    %p33 = scmp.eq.s32.totalorder %s13, 0
    %p34 = por %p32, %p33
    %p35 = scmp.ne.s32.totalorder %s21, %s22
    %p36 = scmp.eq.s32.totalorder %s14, 1
    %p37 = por %p35, %p36
    %p39 = scmp.ne.s32.totalorder %s22, %s38
    %p40 = scmp.eq.s32.totalorder %s14, 0
    %p41 = por %p39, %p40
    %s43 = sadd.s32 %s42, 1
    %p46 = scmp.eq.s32.totalorder %s8, 1
    %p47 = scmp.ne.s32.totalorder %s42, %s44
    %p48 = scmp.eq.s32.totalorder %s8, 0
    %p49 = por %p47, %p48
    %p50 = scmp.ne.s32.totalorder %s42, %s44
    %p51 = scmp.eq.s32.totalorder %s13, 1
    %p52 = por %p50, %p51
    %p53 = scmp.ne.s32.totalorder %s44, %s45
    %p54 = scmp.eq.s32.totalorder %s13, 0
    %p55 = por %p53, %p54
    %p56 = scmp.ne.s32.totalorder %s44, %s45
    %p57 = scmp.eq.s32.totalorder %s14, 1
    %p58 = por %p56, %p57
    %p60 = scmp.ne.s32.totalorder %s45, %s59
    %p61 = scmp.eq.s32.totalorder %s14, 0
    %p62 = por %p60, %p61
    %s63 = ssub.s32 %s8, %s15
    %p64 = scmp.eq.s32.totalorder %s63, 0
    %s66 = sadd.s32 %s65, 1
    %s67 = scalar_select %p64, %s65, %s66
    %p70 = pneg %p64
    %p71 = scmp.eq.s32.totalorder %s8, 1
    %p72 = por %p70, %p71
    %p73 = scmp.ne.s32.totalorder %s65, %s68
    %p74 = scmp.eq.s32.totalorder %s8, 0
    %p75 = por %p73, %p74
    %p76 = scmp.ne.s32.totalorder %s65, %s68
    %p77 = scmp.eq.s32.totalorder %s13, 1
    %p78 = por %p76, %p77
    %p79 = scmp.ne.s32.totalorder %s68, %s69
    %p80 = scmp.eq.s32.totalorder %s13, 0
    %p81 = por %p79, %p80
    %p82 = scmp.ne.s32.totalorder %s68, %s69
    %p83 = scmp.eq.s32.totalorder %s14, 1
    %p84 = por %p82, %p83
    %p86 = scmp.ne.s32.totalorder %s69, %s85
    %p87 = scmp.eq.s32.totalorder %s14, 0
    %p88 = por %p86, %p87
    %p89 = scmp.le.s32.totalorder 1, %s8
    %p90 = scmp.lt.s32.totalorder %s8, 3
    %p91 = pnand %p89, %p90
    %p92 = pneg %p91
    // Predicated region
    $region9: #{tpu_custom_call.1} parent=5 // pred_check
      _
    $region10: #{tpu_custom_call.1} parent=5 // pred_check_branch
      %94 = sbr.rel (%p91) target = $region12
    $region11: #{tpu_custom_call.1} parent=5 // pred_region
      %s95 = ssub.s32 %s8, 1
      // Predicated region
      $region13: #{tpu_custom_call.1} parent=11 // pred_check
        %p96 = pneg %p55
      $region14: #{tpu_custom_call.1} parent=11 // pred_check_branch
        %98 = sbr.rel (%p96) target = $region16
      $region15: #{tpu_custom_call.1} parent=11 // pred_region
        _
      $region16: #{tpu_custom_call.1} parent=11 // pred_fallthru
        _
    $region12: #{tpu_custom_call.1} parent=5 // pred_fallthru
      _
    %p99 = scmp.lt.s32.totalorder %s8, 2
    // Predicated region
    $region17: #{tpu_custom_call.1} parent=5 // pred_check
      %p100 = pneg %p99
    $region18: #{tpu_custom_call.1} parent=5 // pred_check_branch
      %102 = sbr.rel (%p100) target = $region20
    $region19: #{tpu_custom_call.1} parent=5 // pred_region
      // Predicated region
      $region21: #{tpu_custom_call.1} parent=19 // pred_check
        %p103 = pneg %p28
      $region22: #{tpu_custom_call.1} parent=19 // pred_check_branch
        %105 = sbr.rel (%p103) target = $region24
      $region23: #{tpu_custom_call.1} parent=19 // pred_region
        %s106 = smul.u32 20, %s8
        %p107 = scmp.lt.s32.totalorder %s106, 39
        %s108 = scalar_select %p107, %s106, 39
        %s109 = smul.addr %s108, 8
        %s110 = scalar_lea.vmem %s0, %s109
        %s111 = smul.u32 20, %s8
      $region24: #{tpu_custom_call.1} parent=19 // pred_fallthru
        _
    $region20: #{tpu_custom_call.1} parent=5 // pred_fallthru
      _
    %p112 = scmp.le.s32.totalorder 1, %s8
    %p113 = scmp.lt.s32.totalorder %s8, 3
    %p114 = pnand %p112, %p113
    %p115 = pneg %p114
    // Predicated region
    $region25: #{tpu_custom_call.1} parent=5 // pred_check
      _
    $region26: #{tpu_custom_call.1} parent=5 // pred_check_branch
      %117 = sbr.rel (%p114) target = $region28
    $region27: #{tpu_custom_call.1} parent=5 // pred_region
      %s118 = ssub.s32 %s8, 1
      %s119 = smul.u32 20, %s13
      %p120 = scmp.lt.s32.totalorder %s119, 39
      %s121 = scalar_select %p120, %s119, 39
      %s122 = smul.addr %s121, 8
      %s123 = scalar_lea.vmem %s0, %s122
      %p124 = pneg %p34
      %p125 = pneg %p31
      %p126 = pneg %p55
      %p127 = pneg %p52
      %p128 = pneg %p81
      %p129 = pneg %p78
      %s130 = smul.u32 20, %s13
      %p131 = scmp.lt.s32.totalorder %s130, 39
      %s132 = scalar_select %p131, %s130, 39
      %s133 = smul.addr %s132, 3
      %s134 = smul.addr %s133, 8
      %s135 = scalar_lea.vmem %s2, %s134
      %s136 = smul.u32 20, %s13
      %p137 = scmp.lt.s32.totalorder %s136, 39
      %s138 = scalar_select %p137, %s136, 39
      %s139 = smul.addr %s138, 8
      %s140 = scalar_lea.vmem %s0, %s139
      %s141 = smul.u32 20, %s13
      %s142 = smul.u32 20, %s13
      %p143 = scmp.lt.s32.totalorder %s142, 39
      %s144 = scalar_select %p143, %s142, 39
      %s145 = smul.addr %s144, 3
      %s146 = smul.addr %s145, 8
      %s147 = scalar_lea.vmem %s2, %s146
      %s148 = smul.u32 20, %s13
      %v149 = vlaneseq
      %v150 = vand.u32 %v149, 127
      %v151 = vld [vmem:[%s140] sm:$0xff]
      %v152 = vld [vmem:[%s140 + $0x8] sm:$0xff]
      %v153 = vld [vmem:[%s140 + $0x10] sm:$0xff]
      %v154 = vld [vmem:[%s140 + $0x18] sm:$0xff]
      %v155 = vld [vmem:[%s140 + $0x20] sm:$0xff]
      %v156 = vld [vmem:[%s140 + $0x28] sm:$0xff]
      %v157 = vld [vmem:[%s140 + $0x30] sm:$0xff]
      %v158 = vld [vmem:[%s140 + $0x38] sm:$0xff]
      %v159 = vld [vmem:[%s140 + $0x40] sm:$0xff]
      %v160 = vld [vmem:[%s140 + $0x48] sm:$0xff]
      %v161 = vld [vmem:[%s140 + $0x50] sm:$0xff]
      %v162 = vld [vmem:[%s140 + $0x58] sm:$0xff]
      %v163 = vld [vmem:[%s140 + $0x60] sm:$0xff]
      %v164 = vld [vmem:[%s140 + $0x68] sm:$0xff]
      %v165 = vld [vmem:[%s140 + $0x70] sm:$0xff]
      %v166 = vld [vmem:[%s140 + $0x78] sm:$0xff]
      %v167 = vld [vmem:[%s140 + $0x80] sm:$0xff]
      %v168 = vld [vmem:[%s140 + $0x88] sm:$0xff]
      %v169 = vld [vmem:[%s140 + $0x90] sm:$0xff]
      %v170 = vld [vmem:[%s140 + $0x98] sm:$0xff]
      %171 = vset.pattern.permute.xlu0 0
      %172 = vperm.xlu0 %171, %v151
      %v173 = vpop.permute.xlu0 %172
      %174 = vset.pattern.permute.xlu0 0
      %175 = vperm.xlu0 %174, %v152
      %v176 = vpop.permute.xlu0 %175
      %177 = vset.pattern.permute.xlu0 0
      %178 = vperm.xlu0 %177, %v153
      %v179 = vpop.permute.xlu0 %178
      %180 = vset.pattern.permute.xlu0 0
      %181 = vperm.xlu0 %180, %v154
      %v182 = vpop.permute.xlu0 %181
      %183 = vset.pattern.permute.xlu0 0
      %184 = vperm.xlu0 %183, %v155
      %v185 = vpop.permute.xlu0 %184
      %186 = vset.pattern.permute.xlu0 0
      %187 = vperm.xlu0 %186, %v156
      %v188 = vpop.permute.xlu0 %187
      %189 = vset.pattern.permute.xlu0 0
      %190 = vperm.xlu0 %189, %v157
      %v191 = vpop.permute.xlu0 %190
      %192 = vset.pattern.permute.xlu0 0
      %193 = vperm.xlu0 %192, %v158
      %v194 = vpop.permute.xlu0 %193
      %195 = vset.pattern.permute.xlu0 0
      %196 = vperm.xlu0 %195, %v159
      %v197 = vpop.permute.xlu0 %196
      %198 = vset.pattern.permute.xlu0 0
      %199 = vperm.xlu0 %198, %v160
      %v200 = vpop.permute.xlu0 %199
      %201 = vset.pattern.permute.xlu0 0
      %202 = vperm.xlu0 %201, %v161
      %v203 = vpop.permute.xlu0 %202
      %204 = vset.pattern.permute.xlu0 0
      %205 = vperm.xlu0 %204, %v162
      %v206 = vpop.permute.xlu0 %205
      %207 = vset.pattern.permute.xlu0 0
      %208 = vperm.xlu0 %207, %v163
      %v209 = vpop.permute.xlu0 %208
      %210 = vset.pattern.permute.xlu0 0
      %211 = vperm.xlu0 %210, %v164
      %v212 = vpop.permute.xlu0 %211
      %213 = vset.pattern.permute.xlu0 0
      %214 = vperm.xlu0 %213, %v165
      %v215 = vpop.permute.xlu0 %214
      %216 = vset.pattern.permute.xlu0 0
      %217 = vperm.xlu0 %216, %v166
      %v218 = vpop.permute.xlu0 %217
      %219 = vset.pattern.permute.xlu0 0
      %220 = vperm.xlu0 %219, %v167
      %v221 = vpop.permute.xlu0 %220
      %222 = vset.pattern.permute.xlu0 0
      %223 = vperm.xlu0 %222, %v168
      %v224 = vpop.permute.xlu0 %223
      %225 = vset.pattern.permute.xlu0 0
      %226 = vperm.xlu0 %225, %v169
      %v227 = vpop.permute.xlu0 %226
      %228 = vset.pattern.permute.xlu0 0
      %229 = vperm.xlu0 %228, %v170
      %v230 = vpop.permute.xlu0 %229
      %vm231 = vcmp.eq.s32.totalorder %v150, %v173
      %vm232 = vcmp.eq.s32.totalorder %v150, %v176
      %vm233 = vcmp.eq.s32.totalorder %v150, %v179
      %vm234 = vcmp.eq.s32.totalorder %v150, %v182
      %vm235 = vcmp.eq.s32.totalorder %v150, %v185
      %vm236 = vcmp.eq.s32.totalorder %v150, %v188
      %vm237 = vcmp.eq.s32.totalorder %v150, %v191
      %vm238 = vcmp.eq.s32.totalorder %v150, %v194
      %vm239 = vcmp.eq.s32.totalorder %v150, %v197
      %vm240 = vcmp.eq.s32.totalorder %v150, %v200
      %vm241 = vcmp.eq.s32.totalorder %v150, %v203
      %vm242 = vcmp.eq.s32.totalorder %v150, %v206
      %vm243 = vcmp.eq.s32.totalorder %v150, %v209
      %vm244 = vcmp.eq.s32.totalorder %v150, %v212
      %vm245 = vcmp.eq.s32.totalorder %v150, %v215
      %vm246 = vcmp.eq.s32.totalorder %v150, %v218
      %vm247 = vcmp.eq.s32.totalorder %v150, %v221
      %vm248 = vcmp.eq.s32.totalorder %v150, %v224
      %vm249 = vcmp.eq.s32.totalorder %v150, %v227
      %vm250 = vcmp.eq.s32.totalorder %v150, %v230
      %v251 = vsel %vm231, 1, 0
      %v252 = vsel %vm232, 1, 0
      %v253 = vsel %vm233, 1, 0
      %v254 = vsel %vm234, 1, 0
      %v255 = vsel %vm235, 1, 0
      %v256 = vsel %vm236, 1, 0
      %v257 = vsel %vm237, 1, 0
      %v258 = vsel %vm238, 1, 0
      %v259 = vsel %vm239, 1, 0
      %v260 = vsel %vm240, 1, 0
      %v261 = vsel %vm241, 1, 0
      %v262 = vsel %vm242, 1, 0
      %v263 = vsel %vm243, 1, 0
      %v264 = vsel %vm244, 1, 0
      %v265 = vsel %vm245, 1, 0
      %v266 = vsel %vm246, 1, 0
      %v267 = vsel %vm247, 1, 0
      %v268 = vsel %vm248, 1, 0
      %v269 = vsel %vm249, 1, 0
      %v270 = vsel %vm250, 1, 0
      %v271 = vcvt.s32.f32 %v251
      %v272 = vcvt.s32.f32 %v252
      %v273 = vcvt.s32.f32 %v253
      %v274 = vcvt.s32.f32 %v254
      %v275 = vcvt.s32.f32 %v255
      %v276 = vcvt.s32.f32 %v256
      %v277 = vcvt.s32.f32 %v257
      %v278 = vcvt.s32.f32 %v258
      %v279 = vcvt.s32.f32 %v259
      %v280 = vcvt.s32.f32 %v260
      %v281 = vcvt.s32.f32 %v261
      %v282 = vcvt.s32.f32 %v262
      %v283 = vcvt.s32.f32 %v263
      %v284 = vcvt.s32.f32 %v264
      %v285 = vcvt.s32.f32 %v265
      %v286 = vcvt.s32.f32 %v266
      %v287 = vcvt.s32.f32 %v267
      %v288 = vcvt.s32.f32 %v268
      %v289 = vcvt.s32.f32 %v269
      %v290 = vcvt.s32.f32 %v270
      %v291 = vld [vmem:[%s1] sm:$0xff]
      %v292 = vld [vmem:[%s1 + $0x8] sm:$0xff]
      %v293 = vld [vmem:[%s1 + $0x10] sm:$0xff]
      %v294 = vld [vmem:[%s1 + $0x18] sm:$0xff]
      %v295 = vld [vmem:[%s1 + $0x20] sm:$0xff]
      %v296 = vld [vmem:[%s1 + $0x28] sm:$0xff]
      %v297 = vld [vmem:[%s1 + $0x30] sm:$0xff]
      %v298 = vld [vmem:[%s1 + $0x38] sm:$0xff]
      %v299 = vld [vmem:[%s1 + $0x40] sm:$0xff]
      %v300 = vld [vmem:[%s1 + $0x48] sm:$0xff]
      %v301 = vld [vmem:[%s1 + $0x50] sm:$0xff]
      %v302 = vld [vmem:[%s1 + $0x58] sm:$0xff]
      %v303 = vld [vmem:[%s1 + $0x60] sm:$0xff]
      %v304 = vld [vmem:[%s1 + $0x68] sm:$0xff]
      %v305 = vld [vmem:[%s1 + $0x70] sm:$0xff]
      %v306 = vld [vmem:[%s1 + $0x78] sm:$0xff]
      %v307 = vld [vmem:[%s1 + $0x80] sm:$0xff]
      %v308 = vld [vmem:[%s1 + $0x88] sm:$0xff]
      %v309 = vld [vmem:[%s1 + $0x90] sm:$0x7]
      %v310 = vld [vmem:[%s1 + $0x98] sm:$0x7]
      %v311 = vld [vmem:[%s1 + $0xa0] sm:$0x7]
      %vm312 = vcmask 416768
      %v314 = vsel %vm312, %v271, 0
      %v317 = vsel %vm312, %v272, 0
      %v320 = vsel %vm312, %v273, 0
      %v323 = vsel %vm312, %v274, 0
      %v326 = vsel %vm312, %v275, 0
      %v329 = vsel %vm312, %v276, 0
      %v332 = vsel %vm312, %v277, 0
      %v335 = vsel %vm312, %v278, 0
      %v338 = vsel %vm312, %v279, 0
      %v341 = vsel %vm312, %v280, 0
      %v344 = vsel %vm312, %v281, 0
      %v347 = vsel %vm312, %v282, 0
      %v350 = vsel %vm312, %v283, 0
      %v353 = vsel %vm312, %v284, 0
      %v356 = vsel %vm312, %v285, 0
      %v359 = vsel %vm312, %v286, 0
      %v362 = vsel %vm312, %v287, 0
      %v365 = vsel %vm312, %v288, 0
      %v368 = vsel %vm312, %v289, 0
      %v371 = vsel %vm312, %v290, 0
      %vm373 = vcmask 1042432
      %v375 = vsel %vm373, %v309, 0
      %v378 = vsel %vm373, %v310, 0
      %v381 = vsel %vm373, %v311, 0
      %383 = vmatpush.msra.mxu0 0.0
      %384 = vmatpush.msra.mxu0 0.0
      %385 = vmatpush.msra.mxu0 0.0
      %386 = vmatpush.msra.mxu0 0.0
      %387 = vmatpush.msra.mxu0 0.0
      %388 = vmatpush.msra.mxu0 0.0
      %389 = vmatpush.msra.mxu0 0.0
      %390 = vmatpush.msra.mxu0 0.0
      %391 = vmatpush.msra.mxu0 0.0
      %v392 = vand.u32 %v375, 4294901760
      %393 = vmatpush.msra.mxu0 %v392
      %v394 = vand.u32 %v306, 4294901760
      %395 = vmatpush.msra.mxu0 %v394
      %v396 = vand.u32 %v303, 4294901760
      %397 = vmatpush.msra.mxu0 %v396
      %v398 = vand.u32 %v300, 4294901760
      %399 = vmatpush.msra.mxu0 %v398
      %v400 = vand.u32 %v297, 4294901760
      %401 = vmatpush.msra.mxu0 %v400
      %v402 = vand.u32 %v294, 4294901760
      %403 = vmatpush.msra.mxu0 %v402
      %v404 = vand.u32 %v291, 4294901760
      %405 = vmatpush.msra.mxu0 %v404
      %v406 = vand.u32 %v314, 4294901760
      %v407 = vsub.f32 %v314, %v406
      %v408 = vand.u32 %v407, 4294901760
      %v409 = vsub.f32 %v407, %v408
      %v410 = vand.u32 %v409, 4294901760
      %411 = vmatmul.f32.gmra.mxu0 %v410
      %v412 = vpop.f32.mrf.mxu0
      %v413 = vadd.f32 0.0, %v412
      %v414 = vand.u32 %v317, 4294901760
      %v415 = vsub.f32 %v317, %v414
      %v416 = vand.u32 %v415, 4294901760
      %v417 = vsub.f32 %v415, %v416
      %v418 = vand.u32 %v417, 4294901760
      %419 = vmatmul.f32.gmra.mxu0 %v418
      %v420 = vpop.f32.mrf.mxu0
      %v421 = vadd.f32 0.0, %v420
      %v422 = vand.u32 %v320, 4294901760
      %v423 = vsub.f32 %v320, %v422
      %v424 = vand.u32 %v423, 4294901760
      %v425 = vsub.f32 %v423, %v424
      %v426 = vand.u32 %v425, 4294901760
      %427 = vmatmul.f32.gmra.mxu0 %v426
      %v428 = vpop.f32.mrf.mxu0
      %v429 = vadd.f32 0.0, %v428
      %v430 = vand.u32 %v323, 4294901760
      %v431 = vsub.f32 %v323, %v430
      %v432 = vand.u32 %v431, 4294901760
      %v433 = vsub.f32 %v431, %v432
      %v434 = vand.u32 %v433, 4294901760
      %435 = vmatmul.f32.gmra.mxu0 %v434
      %v436 = vpop.f32.mrf.mxu0
      %v437 = vadd.f32 0.0, %v436
      %v438 = vand.u32 %v326, 4294901760
      %v439 = vsub.f32 %v326, %v438
      %v440 = vand.u32 %v439, 4294901760
      %v441 = vsub.f32 %v439, %v440
      %v442 = vand.u32 %v441, 4294901760
      %443 = vmatmul.f32.gmra.mxu0 %v442
      %v444 = vpop.f32.mrf.mxu0
      %v445 = vadd.f32 0.0, %v444
      %v446 = vand.u32 %v329, 4294901760
      %v447 = vsub.f32 %v329, %v446
      %v448 = vand.u32 %v447, 4294901760
      %v449 = vsub.f32 %v447, %v448
      %v450 = vand.u32 %v449, 4294901760
      %451 = vmatmul.f32.gmra.mxu0 %v450
      %v452 = vpop.f32.mrf.mxu0
      %v453 = vadd.f32 0.0, %v452
      %v454 = vand.u32 %v332, 4294901760
      %v455 = vsub.f32 %v332, %v454
      %v456 = vand.u32 %v455, 4294901760
      %v457 = vsub.f32 %v455, %v456
      %v458 = vand.u32 %v457, 4294901760
      %459 = vmatmul.f32.gmra.mxu0 %v458
      %v460 = vpop.f32.mrf.mxu0
      %v461 = vadd.f32 0.0, %v460
      %v462 = vand.u32 %v335, 4294901760
      %v463 = vsub.f32 %v335, %v462
      %v464 = vand.u32 %v463, 4294901760
      %v465 = vsub.f32 %v463, %v464
      %v466 = vand.u32 %v465, 4294901760
      %467 = vmatmul.f32.gmra.mxu0 %v466
      %v468 = vpop.f32.mrf.mxu0
      %v469 = vadd.f32 0.0, %v468
      %v470 = vand.u32 %v338, 4294901760
      %v471 = vsub.f32 %v338, %v470
      %v472 = vand.u32 %v471, 4294901760
      %v473 = vsub.f32 %v471, %v472
      %v474 = vand.u32 %v473, 4294901760
      %475 = vmatmul.f32.gmra.mxu0 %v474
      %v476 = vpop.f32.mrf.mxu0
      %v477 = vadd.f32 0.0, %v476
      %v478 = vand.u32 %v341, 4294901760
      %v479 = vsub.f32 %v341, %v478
      %v480 = vand.u32 %v479, 4294901760
      %v481 = vsub.f32 %v479, %v480
      %v482 = vand.u32 %v481, 4294901760
      %483 = vmatmul.f32.gmra.mxu0 %v482
      %v484 = vpop.f32.mrf.mxu0
      %v485 = vadd.f32 0.0, %v484
      %v486 = vand.u32 %v344, 4294901760
      %v487 = vsub.f32 %v344, %v486
      %v488 = vand.u32 %v487, 4294901760
      %v489 = vsub.f32 %v487, %v488
      %v490 = vand.u32 %v489, 4294901760
      %491 = vmatmul.f32.gmra.mxu0 %v490
      %v492 = vpop.f32.mrf.mxu0
      %v493 = vadd.f32 0.0, %v492
      %v494 = vand.u32 %v347, 4294901760
      %v495 = vsub.f32 %v347, %v494
      %v496 = vand.u32 %v495, 4294901760
      %v497 = vsub.f32 %v495, %v496
      %v498 = vand.u32 %v497, 4294901760
      %499 = vmatmul.f32.gmra.mxu0 %v498
      %v500 = vpop.f32.mrf.mxu0
      %v501 = vadd.f32 0.0, %v500
      %v502 = vand.u32 %v350, 4294901760
      %v503 = vsub.f32 %v350, %v502
      %v504 = vand.u32 %v503, 4294901760
      %v505 = vsub.f32 %v503, %v504
      %v506 = vand.u32 %v505, 4294901760
      %507 = vmatmul.f32.gmra.mxu0 %v506
      %v508 = vpop.f32.mrf.mxu0
      %v509 = vadd.f32 0.0, %v508
      %v510 = vand.u32 %v353, 4294901760
      %v511 = vsub.f32 %v353, %v510
      %v512 = vand.u32 %v511, 4294901760
      %v513 = vsub.f32 %v511, %v512
      %v514 = vand.u32 %v513, 4294901760
      %515 = vmatmul.f32.gmra.mxu0 %v514
      %v516 = vpop.f32.mrf.mxu0
      %v517 = vadd.f32 0.0, %v516
      %v518 = vand.u32 %v356, 4294901760
      %v519 = vsub.f32 %v356, %v518
      %v520 = vand.u32 %v519, 4294901760
      %v521 = vsub.f32 %v519, %v520
      %v522 = vand.u32 %v521, 4294901760
      %523 = vmatmul.f32.gmra.mxu0 %v522
      %v524 = vpop.f32.mrf.mxu0
      %v525 = vadd.f32 0.0, %v524
      %v526 = vand.u32 %v359, 4294901760
      %v527 = vsub.f32 %v359, %v526
      %v528 = vand.u32 %v527, 4294901760
      %v529 = vsub.f32 %v527, %v528
      %v530 = vand.u32 %v529, 4294901760
      %531 = vmatmul.f32.gmra.mxu0 %v530
      %v532 = vpop.f32.mrf.mxu0
      %v533 = vadd.f32 0.0, %v532
      %v534 = vand.u32 %v362, 4294901760
      %v535 = vsub.f32 %v362, %v534
      %v536 = vand.u32 %v535, 4294901760
      %v537 = vsub.f32 %v535, %v536
      %v538 = vand.u32 %v537, 4294901760
      %539 = vmatmul.f32.gmra.mxu0 %v538
      %v540 = vpop.f32.mrf.mxu0
      %v541 = vadd.f32 0.0, %v540
      %v542 = vand.u32 %v365, 4294901760
      %v543 = vsub.f32 %v365, %v542
      %v544 = vand.u32 %v543, 4294901760
      %v545 = vsub.f32 %v543, %v544
      %v546 = vand.u32 %v545, 4294901760
      %547 = vmatmul.f32.gmra.mxu0 %v546
      %v548 = vpop.f32.mrf.mxu0
      %v549 = vadd.f32 0.0, %v548
      %v550 = vand.u32 %v368, 4294901760
      %v551 = vsub.f32 %v368, %v550
      %v552 = vand.u32 %v551, 4294901760
      %v553 = vsub.f32 %v551, %v552
      %v554 = vand.u32 %v553, 4294901760
      %555 = vmatmul.f32.gmra.mxu0 %v554
      %v556 = vpop.f32.mrf.mxu0
      %v557 = vadd.f32 0.0, %v556
      %v558 = vand.u32 %v371, 4294901760
      %v559 = vsub.f32 %v371, %v558
      %v560 = vand.u32 %v559, 4294901760
      %v561 = vsub.f32 %v559, %v560
      %v562 = vand.u32 %v561, 4294901760
      %563 = vmatmul.f32.gmra.mxu0 %v562
      %v564 = vpop.f32.mrf.mxu0
      %v565 = vadd.f32 0.0, %v564
      %566 = vdwg.mxu0
      %567 = vmatpush.msra.mxu0 0.0
      %568 = vmatpush.msra.mxu0 0.0
      %569 = vmatpush.msra.mxu0 0.0
      %570 = vmatpush.msra.mxu0 0.0
      %571 = vmatpush.msra.mxu0 0.0
      %572 = vmatpush.msra.mxu0 0.0
      %573 = vmatpush.msra.mxu0 0.0
      %574 = vmatpush.msra.mxu0 0.0
      %575 = vmatpush.msra.mxu0 0.0
      %v576 = vand.u32 %v375, 4294901760
      %v577 = vsub.f32 %v375, %v576
      %v578 = vand.u32 %v577, 4294901760
      %v579 = vsub.f32 %v577, %v578
      %v580 = vand.u32 %v579, 4294901760
      %581 = vmatpush.msra.mxu0 %v580
      %v582 = vand.u32 %v306, 4294901760
      %v583 = vsub.f32 %v306, %v582
      %v584 = vand.u32 %v583, 4294901760
      %v585 = vsub.f32 %v583, %v584
      %v586 = vand.u32 %v585, 4294901760
      %587 = vmatpush.msra.mxu0 %v586
      %v588 = vand.u32 %v303, 4294901760
      %v589 = vsub.f32 %v303, %v588
      %v590 = vand.u32 %v589, 4294901760
      %v591 = vsub.f32 %v589, %v590
      %v592 = vand.u32 %v591, 4294901760
      %593 = vmatpush.msra.mxu0 %v592
      %v594 = vand.u32 %v300, 4294901760
      %v595 = vsub.f32 %v300, %v594
      %v596 = vand.u32 %v595, 4294901760
      %v597 = vsub.f32 %v595, %v596
      %v598 = vand.u32 %v597, 4294901760
      %599 = vmatpush.msra.mxu0 %v598
      %v600 = vand.u32 %v297, 4294901760
      %v601 = vsub.f32 %v297, %v600
      %v602 = vand.u32 %v601, 4294901760
      %v603 = vsub.f32 %v601, %v602
      %v604 = vand.u32 %v603, 4294901760
      %605 = vmatpush.msra.mxu0 %v604
      %v606 = vand.u32 %v294, 4294901760
      %v607 = vsub.f32 %v294, %v606
      %v608 = vand.u32 %v607, 4294901760
      %v609 = vsub.f32 %v607, %v608
      %v610 = vand.u32 %v609, 4294901760
      %611 = vmatpush.msra.mxu0 %v610
      %v612 = vand.u32 %v291, 4294901760
      %v613 = vsub.f32 %v291, %v612
      %v614 = vand.u32 %v613, 4294901760
      %v615 = vsub.f32 %v613, %v614
      %v616 = vand.u32 %v615, 4294901760
      %617 = vmatpush.msra.mxu0 %v616
      %v618 = vand.u32 %v314, 4294901760
      %619 = vmatmul.f32.gmra.mxu0 %v618
      %v620 = vpop.f32.mrf.mxu0
      %v621 = vadd.f32 %v413, %v620
      %v622 = vand.u32 %v317, 4294901760
      %623 = vmatmul.f32.gmra.mxu0 %v622
      %v624 = vpop.f32.mrf.mxu0
      %v625 = vadd.f32 %v421, %v624
      %v626 = vand.u32 %v320, 4294901760
      %627 = vmatmul.f32.gmra.mxu0 %v626
      %v628 = vpop.f32.mrf.mxu0
      %v629 = vadd.f32 %v429, %v628
      %v630 = vand.u32 %v323, 4294901760
      %631 = vmatmul.f32.gmra.mxu0 %v630
      %v632 = vpop.f32.mrf.mxu0
      %v633 = vadd.f32 %v437, %v632
      %v634 = vand.u32 %v326, 4294901760
      %635 = vmatmul.f32.gmra.mxu0 %v634
      %v636 = vpop.f32.mrf.mxu0
      %v637 = vadd.f32 %v445, %v636
      %v638 = vand.u32 %v329, 4294901760
      %639 = vmatmul.f32.gmra.mxu0 %v638
      %v640 = vpop.f32.mrf.mxu0
      %v641 = vadd.f32 %v453, %v640
      %v642 = vand.u32 %v332, 4294901760
      %643 = vmatmul.f32.gmra.mxu0 %v642
      %v644 = vpop.f32.mrf.mxu0
      %v645 = vadd.f32 %v461, %v644
      %v646 = vand.u32 %v335, 4294901760
      %647 = vmatmul.f32.gmra.mxu0 %v646
      %v648 = vpop.f32.mrf.mxu0
      %v649 = vadd.f32 %v469, %v648
      %v650 = vand.u32 %v338, 4294901760
      %651 = vmatmul.f32.gmra.mxu0 %v650
      %v652 = vpop.f32.mrf.mxu0
      %v653 = vadd.f32 %v477, %v652
      %v654 = vand.u32 %v341, 4294901760
      %655 = vmatmul.f32.gmra.mxu0 %v654
      %v656 = vpop.f32.mrf.mxu0
      %v657 = vadd.f32 %v485, %v656
      %v658 = vand.u32 %v344, 4294901760
      %659 = vmatmul.f32.gmra.mxu0 %v658
      %v660 = vpop.f32.mrf.mxu0
      %v661 = vadd.f32 %v493, %v660
      %v662 = vand.u32 %v347, 4294901760
      %663 = vmatmul.f32.gmra.mxu0 %v662
      %v664 = vpop.f32.mrf.mxu0
      %v665 = vadd.f32 %v501, %v664
      %v666 = vand.u32 %v350, 4294901760
      %667 = vmatmul.f32.gmra.mxu0 %v666
      %v668 = vpop.f32.mrf.mxu0
      %v669 = vadd.f32 %v509, %v668
      %v670 = vand.u32 %v353, 4294901760
      %671 = vmatmul.f32.gmra.mxu0 %v670
      %v672 = vpop.f32.mrf.mxu0
      %v673 = vadd.f32 %v517, %v672
      %v674 = vand.u32 %v356, 4294901760
      %675 = vmatmul.f32.gmra.mxu0 %v674
      %v676 = vpop.f32.mrf.mxu0
      %v677 = vadd.f32 %v525, %v676
      %v678 = vand.u32 %v359, 4294901760
      %679 = vmatmul.f32.gmra.mxu0 %v678
      %v680 = vpop.f32.mrf.mxu0
      %v681 = vadd.f32 %v533, %v680
      %v682 = vand.u32 %v362, 4294901760
      %683 = vmatmul.f32.gmra.mxu0 %v682
      %v684 = vpop.f32.mrf.mxu0
      %v685 = vadd.f32 %v541, %v684
      %v686 = vand.u32 %v365, 4294901760
      %687 = vmatmul.f32.gmra.mxu0 %v686
      %v688 = vpop.f32.mrf.mxu0
      %v689 = vadd.f32 %v549, %v688
      %v690 = vand.u32 %v368, 4294901760
      %691 = vmatmul.f32.gmra.mxu0 %v690
      %v692 = vpop.f32.mrf.mxu0
      %v693 = vadd.f32 %v557, %v692
      %v694 = vand.u32 %v371, 4294901760
      %695 = vmatmul.f32.gmra.mxu0 %v694
      %v696 = vpop.f32.mrf.mxu0
      %v697 = vadd.f32 %v565, %v696
      %698 = vdwg.mxu0
      %699 = vmatpush.msra.mxu0 0.0
      %700 = vmatpush.msra.mxu0 0.0
      %701 = vmatpush.msra.mxu0 0.0
      %702 = vmatpush.msra.mxu0 0.0
      %703 = vmatpush.msra.mxu0 0.0
      %704 = vmatpush.msra.mxu0 0.0
      %705 = vmatpush.msra.mxu0 0.0
      %706 = vmatpush.msra.mxu0 0.0
      %707 = vmatpush.msra.mxu0 0.0
      %v708 = vand.u32 %v375, 4294901760
      %v709 = vsub.f32 %v375, %v708
      %710 = vmatpush.msra.mxu0 %v709
      %v711 = vand.u32 %v306, 4294901760
      %v712 = vsub.f32 %v306, %v711
      %713 = vmatpush.msra.mxu0 %v712
      %v714 = vand.u32 %v303, 4294901760
      %v715 = vsub.f32 %v303, %v714
      %716 = vmatpush.msra.mxu0 %v715
      %v717 = vand.u32 %v300, 4294901760
      %v718 = vsub.f32 %v300, %v717
      %719 = vmatpush.msra.mxu0 %v718
      %v720 = vand.u32 %v297, 4294901760
      %v721 = vsub.f32 %v297, %v720
      %722 = vmatpush.msra.mxu0 %v721
      %v723 = vand.u32 %v294, 4294901760
      %v724 = vsub.f32 %v294, %v723
      %725 = vmatpush.msra.mxu0 %v724
      %v726 = vand.u32 %v291, 4294901760
      %v727 = vsub.f32 %v291, %v726
      %728 = vmatpush.msra.mxu0 %v727
      %v729 = vand.u32 %v314, 4294901760
      %v730 = vsub.f32 %v314, %v729
      %731 = vmatmul.f32.gmra.mxu0 %v730
      %v732 = vpop.f32.mrf.mxu0
      %v733 = vadd.f32 %v621, %v732
      %v734 = vand.u32 %v317, 4294901760
      %v735 = vsub.f32 %v317, %v734
      %736 = vmatmul.f32.gmra.mxu0 %v735
      %v737 = vpop.f32.mrf.mxu0
      %v738 = vadd.f32 %v625, %v737
      %v739 = vand.u32 %v320, 4294901760
      %v740 = vsub.f32 %v320, %v739
      %741 = vmatmul.f32.gmra.mxu0 %v740
      %v742 = vpop.f32.mrf.mxu0
      %v743 = vadd.f32 %v629, %v742
      %v744 = vand.u32 %v323, 4294901760
      %v745 = vsub.f32 %v323, %v744
      %746 = vmatmul.f32.gmra.mxu0 %v745
      %v747 = vpop.f32.mrf.mxu0
      %v748 = vadd.f32 %v633, %v747
      %v749 = vand.u32 %v326, 4294901760
      %v750 = vsub.f32 %v326, %v749
      %751 = vmatmul.f32.gmra.mxu0 %v750
      %v752 = vpop.f32.mrf.mxu0
      %v753 = vadd.f32 %v637, %v752
      %v754 = vand.u32 %v329, 4294901760
      %v755 = vsub.f32 %v329, %v754
      %756 = vmatmul.f32.gmra.mxu0 %v755
      %v757 = vpop.f32.mrf.mxu0
      %v758 = vadd.f32 %v641, %v757
      %v759 = vand.u32 %v332, 4294901760
      %v760 = vsub.f32 %v332, %v759
      %761 = vmatmul.f32.gmra.mxu0 %v760
      %v762 = vpop.f32.mrf.mxu0
      %v763 = vadd.f32 %v645, %v762
      %v764 = vand.u32 %v335, 4294901760
      %v765 = vsub.f32 %v335, %v764
      %766 = vmatmul.f32.gmra.mxu0 %v765
      %v767 = vpop.f32.mrf.mxu0
      %v768 = vadd.f32 %v649, %v767
      %v769 = vand.u32 %v338, 4294901760
      %v770 = vsub.f32 %v338, %v769
      %771 = vmatmul.f32.gmra.mxu0 %v770
      %v772 = vpop.f32.mrf.mxu0
      %v773 = vadd.f32 %v653, %v772
      %v774 = vand.u32 %v341, 4294901760
      %v775 = vsub.f32 %v341, %v774
      %776 = vmatmul.f32.gmra.mxu0 %v775
      %v777 = vpop.f32.mrf.mxu0
      %v778 = vadd.f32 %v657, %v777
      %v779 = vand.u32 %v344, 4294901760
      %v780 = vsub.f32 %v344, %v779
      %781 = vmatmul.f32.gmra.mxu0 %v780
      %v782 = vpop.f32.mrf.mxu0
      %v783 = vadd.f32 %v661, %v782
      %v784 = vand.u32 %v347, 4294901760
      %v785 = vsub.f32 %v347, %v784
      %786 = vmatmul.f32.gmra.mxu0 %v785
      %v787 = vpop.f32.mrf.mxu0
      %v788 = vadd.f32 %v665, %v787
      %v789 = vand.u32 %v350, 4294901760
      %v790 = vsub.f32 %v350, %v789
      %791 = vmatmul.f32.gmra.mxu0 %v790
      %v792 = vpop.f32.mrf.mxu0
      %v793 = vadd.f32 %v669, %v792
      %v794 = vand.u32 %v353, 4294901760
      %v795 = vsub.f32 %v353, %v794
      %796 = vmatmul.f32.gmra.mxu0 %v795
      %v797 = vpop.f32.mrf.mxu0
      %v798 = vadd.f32 %v673, %v797
      %v799 = vand.u32 %v356, 4294901760
      %v800 = vsub.f32 %v356, %v799
      %801 = vmatmul.f32.gmra.mxu0 %v800
      %v802 = vpop.f32.mrf.mxu0
      %v803 = vadd.f32 %v677, %v802
      %v804 = vand.u32 %v359, 4294901760
      %v805 = vsub.f32 %v359, %v804
      %806 = vmatmul.f32.gmra.mxu0 %v805
      %v807 = vpop.f32.mrf.mxu0
      %v808 = vadd.f32 %v681, %v807
      %v809 = vand.u32 %v362, 4294901760
      %v810 = vsub.f32 %v362, %v809
      %811 = vmatmul.f32.gmra.mxu0 %v810
      %v812 = vpop.f32.mrf.mxu0
      %v813 = vadd.f32 %v685, %v812
      %v814 = vand.u32 %v365, 4294901760
      %v815 = vsub.f32 %v365, %v814
      %816 = vmatmul.f32.gmra.mxu0 %v815
      %v817 = vpop.f32.mrf.mxu0
      %v818 = vadd.f32 %v689, %v817
      %v819 = vand.u32 %v368, 4294901760
      %v820 = vsub.f32 %v368, %v819
      %821 = vmatmul.f32.gmra.mxu0 %v820
      %v822 = vpop.f32.mrf.mxu0
      %v823 = vadd.f32 %v693, %v822
      %v824 = vand.u32 %v371, 4294901760
      %v825 = vsub.f32 %v371, %v824
      %826 = vmatmul.f32.gmra.mxu0 %v825
      %v827 = vpop.f32.mrf.mxu0
      %v828 = vadd.f32 %v697, %v827
      %829 = vdwg.mxu0
      %830 = vmatpush.msra.mxu0 0.0
      %831 = vmatpush.msra.mxu0 0.0
      %832 = vmatpush.msra.mxu0 0.0
      %833 = vmatpush.msra.mxu0 0.0
      %834 = vmatpush.msra.mxu0 0.0
      %835 = vmatpush.msra.mxu0 0.0
      %836 = vmatpush.msra.mxu0 0.0
      %837 = vmatpush.msra.mxu0 0.0
      %838 = vmatpush.msra.mxu0 0.0
      %v839 = vand.u32 %v375, 4294901760
      %840 = vmatpush.msra.mxu0 %v839
      %v841 = vand.u32 %v306, 4294901760
      %842 = vmatpush.msra.mxu0 %v841
      %v843 = vand.u32 %v303, 4294901760
      %844 = vmatpush.msra.mxu0 %v843
      %v845 = vand.u32 %v300, 4294901760
      %846 = vmatpush.msra.mxu0 %v845
      %v847 = vand.u32 %v297, 4294901760
      %848 = vmatpush.msra.mxu0 %v847
      %v849 = vand.u32 %v294, 4294901760
      %850 = vmatpush.msra.mxu0 %v849
      %v851 = vand.u32 %v291, 4294901760
      %852 = vmatpush.msra.mxu0 %v851
      %v853 = vand.u32 %v314, 4294901760
      %v854 = vsub.f32 %v314, %v853
      %v855 = vand.u32 %v854, 4294901760
      %856 = vmatmul.f32.gmra.mxu0 %v855
      %v857 = vpop.f32.mrf.mxu0
      %v858 = vadd.f32 %v733, %v857
      %v859 = vand.u32 %v317, 4294901760
      %v860 = vsub.f32 %v317, %v859
      %v861 = vand.u32 %v860, 4294901760
      %862 = vmatmul.f32.gmra.mxu0 %v861
      %v863 = vpop.f32.mrf.mxu0
      %v864 = vadd.f32 %v738, %v863
      %v865 = vand.u32 %v320, 4294901760
      %v866 = vsub.f32 %v320, %v865
      %v867 = vand.u32 %v866, 4294901760
      %868 = vmatmul.f32.gmra.mxu0 %v867
      %v869 = vpop.f32.mrf.mxu0
      %v870 = vadd.f32 %v743, %v869
      %v871 = vand.u32 %v323, 4294901760
      %v872 = vsub.f32 %v323, %v871
      %v873 = vand.u32 %v872, 4294901760
      %874 = vmatmul.f32.gmra.mxu0 %v873
      %v875 = vpop.f32.mrf.mxu0
      %v876 = vadd.f32 %v748, %v875
      %v877 = vand.u32 %v326, 4294901760
      %v878 = vsub.f32 %v326, %v877
      %v879 = vand.u32 %v878, 4294901760
      %880 = vmatmul.f32.gmra.mxu0 %v879
      %v881 = vpop.f32.mrf.mxu0
      %v882 = vadd.f32 %v753, %v881
      %v883 = vand.u32 %v329, 4294901760
      %v884 = vsub.f32 %v329, %v883
      %v885 = vand.u32 %v884, 4294901760
      %886 = vmatmul.f32.gmra.mxu0 %v885
      %v887 = vpop.f32.mrf.mxu0
      %v888 = vadd.f32 %v758, %v887
      %v889 = vand.u32 %v332, 4294901760
      %v890 = vsub.f32 %v332, %v889
      %v891 = vand.u32 %v890, 4294901760
      %892 = vmatmul.f32.gmra.mxu0 %v891
      %v893 = vpop.f32.mrf.mxu0
      %v894 = vadd.f32 %v763, %v893
      %v895 = vand.u32 %v335, 4294901760
      %v896 = vsub.f32 %v335, %v895
      %v897 = vand.u32 %v896, 4294901760
      %898 = vmatmul.f32.gmra.mxu0 %v897
      %v899 = vpop.f32.mrf.mxu0
      %v900 = vadd.f32 %v768, %v899
      %v901 = vand.u32 %v338, 4294901760
      %v902 = vsub.f32 %v338, %v901
      %v903 = vand.u32 %v902, 4294901760
      %904 = vmatmul.f32.gmra.mxu0 %v903
      %v905 = vpop.f32.mrf.mxu0
      %v906 = vadd.f32 %v773, %v905
      %v907 = vand.u32 %v341, 4294901760
      %v908 = vsub.f32 %v341, %v907
      %v909 = vand.u32 %v908, 4294901760
      %910 = vmatmul.f32.gmra.mxu0 %v909
      %v911 = vpop.f32.mrf.mxu0
      %v912 = vadd.f32 %v778, %v911
      %v913 = vand.u32 %v344, 4294901760
      %v914 = vsub.f32 %v344, %v913
      %v915 = vand.u32 %v914, 4294901760
      %916 = vmatmul.f32.gmra.mxu0 %v915
      %v917 = vpop.f32.mrf.mxu0
      %v918 = vadd.f32 %v783, %v917
      %v919 = vand.u32 %v347, 4294901760
      %v920 = vsub.f32 %v347, %v919
      %v921 = vand.u32 %v920, 4294901760
      %922 = vmatmul.f32.gmra.mxu0 %v921
      %v923 = vpop.f32.mrf.mxu0
      %v924 = vadd.f32 %v788, %v923
      %v925 = vand.u32 %v350, 4294901760
      %v926 = vsub.f32 %v350, %v925
      %v927 = vand.u32 %v926, 4294901760
      %928 = vmatmul.f32.gmra.mxu0 %v927
      %v929 = vpop.f32.mrf.mxu0
      %v930 = vadd.f32 %v793, %v929
      %v931 = vand.u32 %v353, 4294901760
      %v932 = vsub.f32 %v353, %v931
      %v933 = vand.u32 %v932, 4294901760
      %934 = vmatmul.f32.gmra.mxu0 %v933
      %v935 = vpop.f32.mrf.mxu0
      %v936 = vadd.f32 %v798, %v935
      %v937 = vand.u32 %v356, 4294901760
      %v938 = vsub.f32 %v356, %v937
      %v939 = vand.u32 %v938, 4294901760
      %940 = vmatmul.f32.gmra.mxu0 %v939
      %v941 = vpop.f32.mrf.mxu0
      %v942 = vadd.f32 %v803, %v941
      %v943 = vand.u32 %v359, 4294901760
      %v944 = vsub.f32 %v359, %v943
      %v945 = vand.u32 %v944, 4294901760
      %946 = vmatmul.f32.gmra.mxu0 %v945
      %v947 = vpop.f32.mrf.mxu0
      %v948 = vadd.f32 %v808, %v947
      %v949 = vand.u32 %v362, 4294901760
      %v950 = vsub.f32 %v362, %v949
      %v951 = vand.u32 %v950, 4294901760
      %952 = vmatmul.f32.gmra.mxu0 %v951
      %v953 = vpop.f32.mrf.mxu0
      %v954 = vadd.f32 %v813, %v953
      %v955 = vand.u32 %v365, 4294901760
      %v956 = vsub.f32 %v365, %v955
      %v957 = vand.u32 %v956, 4294901760
      %958 = vmatmul.f32.gmra.mxu0 %v957
      %v959 = vpop.f32.mrf.mxu0
      %v960 = vadd.f32 %v818, %v959
      %v961 = vand.u32 %v368, 4294901760
      %v962 = vsub.f32 %v368, %v961
      %v963 = vand.u32 %v962, 4294901760
      %964 = vmatmul.f32.gmra.mxu0 %v963
      %v965 = vpop.f32.mrf.mxu0
      %v966 = vadd.f32 %v823, %v965
      %v967 = vand.u32 %v371, 4294901760
      %v968 = vsub.f32 %v371, %v967
      %v969 = vand.u32 %v968, 4294901760
      %970 = vmatmul.f32.gmra.mxu0 %v969
      %v971 = vpop.f32.mrf.mxu0
      %v972 = vadd.f32 %v828, %v971
      %973 = vdwg.mxu0
      %974 = vmatpush.msra.mxu0 0.0
      %975 = vmatpush.msra.mxu0 0.0
      %976 = vmatpush.msra.mxu0 0.0
      %977 = vmatpush.msra.mxu0 0.0
      %978 = vmatpush.msra.mxu0 0.0
      %979 = vmatpush.msra.mxu0 0.0
      %980 = vmatpush.msra.mxu0 0.0
      %981 = vmatpush.msra.mxu0 0.0
      %982 = vmatpush.msra.mxu0 0.0
      %v983 = vand.u32 %v375, 4294901760
      %v984 = vsub.f32 %v375, %v983
      %v985 = vand.u32 %v984, 4294901760
      %986 = vmatpush.msra.mxu0 %v985
      %v987 = vand.u32 %v306, 4294901760
      %v988 = vsub.f32 %v306, %v987
      %v989 = vand.u32 %v988, 4294901760
      %990 = vmatpush.msra.mxu0 %v989
      %v991 = vand.u32 %v303, 4294901760
      %v992 = vsub.f32 %v303, %v991
      %v993 = vand.u32 %v992, 4294901760
      %994 = vmatpush.msra.mxu0 %v993
      %v995 = vand.u32 %v300, 4294901760
      %v996 = vsub.f32 %v300, %v995
      %v997 = vand.u32 %v996, 4294901760
      %998 = vmatpush.msra.mxu0 %v997
      %v999 = vand.u32 %v297, 4294901760
      %v1000 = vsub.f32 %v297, %v999
      %v1001 = vand.u32 %v1000, 4294901760
      %1002 = vmatpush.msra.mxu0 %v1001
      %v1003 = vand.u32 %v294, 4294901760
      %v1004 = vsub.f32 %v294, %v1003
      %v1005 = vand.u32 %v1004, 4294901760
      %1006 = vmatpush.msra.mxu0 %v1005
      %v1007 = vand.u32 %v291, 4294901760
      %v1008 = vsub.f32 %v291, %v1007
      %v1009 = vand.u32 %v1008, 4294901760
      %1010 = vmatpush.msra.mxu0 %v1009
      %v1011 = vand.u32 %v314, 4294901760
      %1012 = vmatmul.f32.gmra.mxu0 %v1011
      %v1013 = vpop.f32.mrf.mxu0
      %v1014 = vadd.f32 %v858, %v1013
      %v1015 = vand.u32 %v317, 4294901760
      %1016 = vmatmul.f32.gmra.mxu0 %v1015
      %v1017 = vpop.f32.mrf.mxu0
      %v1018 = vadd.f32 %v864, %v1017
      %v1019 = vand.u32 %v320, 4294901760
      %1020 = vmatmul.f32.gmra.mxu0 %v1019
      %v1021 = vpop.f32.mrf.mxu0
      %v1022 = vadd.f32 %v870, %v1021
      %v1023 = vand.u32 %v323, 4294901760
      %1024 = vmatmul.f32.gmra.mxu0 %v1023
      %v1025 = vpop.f32.mrf.mxu0
      %v1026 = vadd.f32 %v876, %v1025
      %v1027 = vand.u32 %v326, 4294901760
      %1028 = vmatmul.f32.gmra.mxu0 %v1027
      %v1029 = vpop.f32.mrf.mxu0
      %v1030 = vadd.f32 %v882, %v1029
      %v1031 = vand.u32 %v329, 4294901760
      %1032 = vmatmul.f32.gmra.mxu0 %v1031
      %v1033 = vpop.f32.mrf.mxu0
      %v1034 = vadd.f32 %v888, %v1033
      %v1035 = vand.u32 %v332, 4294901760
      %1036 = vmatmul.f32.gmra.mxu0 %v1035
      %v1037 = vpop.f32.mrf.mxu0
      %v1038 = vadd.f32 %v894, %v1037
      %v1039 = vand.u32 %v335, 4294901760
      %1040 = vmatmul.f32.gmra.mxu0 %v1039
      %v1041 = vpop.f32.mrf.mxu0
      %v1042 = vadd.f32 %v900, %v1041
      %v1043 = vand.u32 %v338, 4294901760
      %1044 = vmatmul.f32.gmra.mxu0 %v1043
      %v1045 = vpop.f32.mrf.mxu0
      %v1046 = vadd.f32 %v906, %v1045
      %v1047 = vand.u32 %v341, 4294901760
      %1048 = vmatmul.f32.gmra.mxu0 %v1047
      %v1049 = vpop.f32.mrf.mxu0
      %v1050 = vadd.f32 %v912, %v1049
      %v1051 = vand.u32 %v344, 4294901760
      %1052 = vmatmul.f32.gmra.mxu0 %v1051
      %v1053 = vpop.f32.mrf.mxu0
      %v1054 = vadd.f32 %v918, %v1053
      %v1055 = vand.u32 %v347, 4294901760
      %1056 = vmatmul.f32.gmra.mxu0 %v1055
      %v1057 = vpop.f32.mrf.mxu0
      %v1058 = vadd.f32 %v924, %v1057
      %v1059 = vand.u32 %v350, 4294901760
      %1060 = vmatmul.f32.gmra.mxu0 %v1059
      %v1061 = vpop.f32.mrf.mxu0
      %v1062 = vadd.f32 %v930, %v1061
      %v1063 = vand.u32 %v353, 4294901760
      %1064 = vmatmul.f32.gmra.mxu0 %v1063
      %v1065 = vpop.f32.mrf.mxu0
      %v1066 = vadd.f32 %v936, %v1065
      %v1067 = vand.u32 %v356, 4294901760
      %1068 = vmatmul.f32.gmra.mxu0 %v1067
      %v1069 = vpop.f32.mrf.mxu0
      %v1070 = vadd.f32 %v942, %v1069
      %v1071 = vand.u32 %v359, 4294901760
      %1072 = vmatmul.f32.gmra.mxu0 %v1071
      %v1073 = vpop.f32.mrf.mxu0
      %v1074 = vadd.f32 %v948, %v1073
      %v1075 = vand.u32 %v362, 4294901760
      %1076 = vmatmul.f32.gmra.mxu0 %v1075
      %v1077 = vpop.f32.mrf.mxu0
      %v1078 = vadd.f32 %v954, %v1077
      %v1079 = vand.u32 %v365, 4294901760
      %1080 = vmatmul.f32.gmra.mxu0 %v1079
      %v1081 = vpop.f32.mrf.mxu0
      %v1082 = vadd.f32 %v960, %v1081
      %v1083 = vand.u32 %v368, 4294901760
      %1084 = vmatmul.f32.gmra.mxu0 %v1083
      %v1085 = vpop.f32.mrf.mxu0
      %v1086 = vadd.f32 %v966, %v1085
      %v1087 = vand.u32 %v371, 4294901760
      %1088 = vmatmul.f32.gmra.mxu0 %v1087
      %v1089 = vpop.f32.mrf.mxu0
      %v1090 = vadd.f32 %v972, %v1089
      %1091 = vdwg.mxu0
      %1092 = vmatpush.msra.mxu0 0.0
      %1093 = vmatpush.msra.mxu0 0.0
      %1094 = vmatpush.msra.mxu0 0.0
      %1095 = vmatpush.msra.mxu0 0.0
      %1096 = vmatpush.msra.mxu0 0.0
      %1097 = vmatpush.msra.mxu0 0.0
      %1098 = vmatpush.msra.mxu0 0.0
      %1099 = vmatpush.msra.mxu0 0.0
      %1100 = vmatpush.msra.mxu0 0.0
      %v1101 = vand.u32 %v375, 4294901760
      %1102 = vmatpush.msra.mxu0 %v1101
      %v1103 = vand.u32 %v306, 4294901760
      %1104 = vmatpush.msra.mxu0 %v1103
      %v1105 = vand.u32 %v303, 4294901760
      %1106 = vmatpush.msra.mxu0 %v1105
      %v1107 = vand.u32 %v300, 4294901760
      %1108 = vmatpush.msra.mxu0 %v1107
      %v1109 = vand.u32 %v297, 4294901760
      %1110 = vmatpush.msra.mxu0 %v1109
      %v1111 = vand.u32 %v294, 4294901760
      %1112 = vmatpush.msra.mxu0 %v1111
      %v1113 = vand.u32 %v291, 4294901760
      %1114 = vmatpush.msra.mxu0 %v1113
      %v1115 = vand.u32 %v314, 4294901760
      %1116 = vmatmul.f32.gmra.mxu0 %v1115
      %v1117 = vpop.f32.mrf.mxu0
      %v1118 = vadd.f32 %v1014, %v1117
      %v1119 = vand.u32 %v317, 4294901760
      %1120 = vmatmul.f32.gmra.mxu0 %v1119
      %v1121 = vpop.f32.mrf.mxu0
      %v1122 = vadd.f32 %v1018, %v1121
      %v1123 = vand.u32 %v320, 4294901760
      %1124 = vmatmul.f32.gmra.mxu0 %v1123
      %v1125 = vpop.f32.mrf.mxu0
      %v1126 = vadd.f32 %v1022, %v1125
      %v1127 = vand.u32 %v323, 4294901760
      %1128 = vmatmul.f32.gmra.mxu0 %v1127
      %v1129 = vpop.f32.mrf.mxu0
      %v1130 = vadd.f32 %v1026, %v1129
      %v1131 = vand.u32 %v326, 4294901760
      %1132 = vmatmul.f32.gmra.mxu0 %v1131
      %v1133 = vpop.f32.mrf.mxu0
      %v1134 = vadd.f32 %v1030, %v1133
      %v1135 = vand.u32 %v329, 4294901760
      %1136 = vmatmul.f32.gmra.mxu0 %v1135
      %v1137 = vpop.f32.mrf.mxu0
      %v1138 = vadd.f32 %v1034, %v1137
      %v1139 = vand.u32 %v332, 4294901760
      %1140 = vmatmul.f32.gmra.mxu0 %v1139
      %v1141 = vpop.f32.mrf.mxu0
      %v1142 = vadd.f32 %v1038, %v1141
      %v1143 = vand.u32 %v335, 4294901760
      %1144 = vmatmul.f32.gmra.mxu0 %v1143
      %v1145 = vpop.f32.mrf.mxu0
      %v1146 = vadd.f32 %v1042, %v1145
      %v1147 = vand.u32 %v338, 4294901760
      %1148 = vmatmul.f32.gmra.mxu0 %v1147
      %v1149 = vpop.f32.mrf.mxu0
      %v1150 = vadd.f32 %v1046, %v1149
      %v1151 = vand.u32 %v341, 4294901760
      %1152 = vmatmul.f32.gmra.mxu0 %v1151
      %v1153 = vpop.f32.mrf.mxu0
      %v1154 = vadd.f32 %v1050, %v1153
      %v1155 = vand.u32 %v344, 4294901760
      %1156 = vmatmul.f32.gmra.mxu0 %v1155
      %v1157 = vpop.f32.mrf.mxu0
      %v1158 = vadd.f32 %v1054, %v1157
      %v1159 = vand.u32 %v347, 4294901760
      %1160 = vmatmul.f32.gmra.mxu0 %v1159
      %v1161 = vpop.f32.mrf.mxu0
      %v1162 = vadd.f32 %v1058, %v1161
      %v1163 = vand.u32 %v350, 4294901760
      %1164 = vmatmul.f32.gmra.mxu0 %v1163
      %v1165 = vpop.f32.mrf.mxu0
      %v1166 = vadd.f32 %v1062, %v1165
      %v1167 = vand.u32 %v353, 4294901760
      %1168 = vmatmul.f32.gmra.mxu0 %v1167
      %v1169 = vpop.f32.mrf.mxu0
      %v1170 = vadd.f32 %v1066, %v1169
      %v1171 = vand.u32 %v356, 4294901760
      %1172 = vmatmul.f32.gmra.mxu0 %v1171
      %v1173 = vpop.f32.mrf.mxu0
      %v1174 = vadd.f32 %v1070, %v1173
      %v1175 = vand.u32 %v359, 4294901760
      %1176 = vmatmul.f32.gmra.mxu0 %v1175
      %v1177 = vpop.f32.mrf.mxu0
      %v1178 = vadd.f32 %v1074, %v1177
      %v1179 = vand.u32 %v362, 4294901760
      %1180 = vmatmul.f32.gmra.mxu0 %v1179
      %v1181 = vpop.f32.mrf.mxu0
      %v1182 = vadd.f32 %v1078, %v1181
      %v1183 = vand.u32 %v365, 4294901760
      %1184 = vmatmul.f32.gmra.mxu0 %v1183
      %v1185 = vpop.f32.mrf.mxu0
      %v1186 = vadd.f32 %v1082, %v1185
      %v1187 = vand.u32 %v368, 4294901760
      %1188 = vmatmul.f32.gmra.mxu0 %v1187
      %v1189 = vpop.f32.mrf.mxu0
      %v1190 = vadd.f32 %v1086, %v1189
      %v1191 = vand.u32 %v371, 4294901760
      %1192 = vmatmul.f32.gmra.mxu0 %v1191
      %v1193 = vpop.f32.mrf.mxu0
      %v1194 = vadd.f32 %v1090, %v1193
      %1195 = vdwg.mxu0
      %1196 = vmatpush.msra.mxu0 0.0
      %1197 = vmatpush.msra.mxu0 0.0
      %1198 = vmatpush.msra.mxu0 0.0
      %1199 = vmatpush.msra.mxu0 0.0
      %1200 = vmatpush.msra.mxu0 0.0
      %1201 = vmatpush.msra.mxu0 0.0
      %1202 = vmatpush.msra.mxu0 0.0
      %1203 = vmatpush.msra.mxu0 0.0
      %1204 = vmatpush.msra.mxu0 0.0
      %v1205 = vand.u32 %v378, 4294901760
      %1206 = vmatpush.msra.mxu0 %v1205
      %v1207 = vand.u32 %v307, 4294901760
      %1208 = vmatpush.msra.mxu0 %v1207
      %v1209 = vand.u32 %v304, 4294901760
      %1210 = vmatpush.msra.mxu0 %v1209
      %v1211 = vand.u32 %v301, 4294901760
      %1212 = vmatpush.msra.mxu0 %v1211
      %v1213 = vand.u32 %v298, 4294901760
      %1214 = vmatpush.msra.mxu0 %v1213
      %v1215 = vand.u32 %v295, 4294901760
      %1216 = vmatpush.msra.mxu0 %v1215
      %v1217 = vand.u32 %v292, 4294901760
      %1218 = vmatpush.msra.mxu0 %v1217
      %v1219 = vand.u32 %v314, 4294901760
      %v1220 = vsub.f32 %v314, %v1219
      %v1221 = vand.u32 %v1220, 4294901760
      %v1222 = vsub.f32 %v1220, %v1221
      %v1223 = vand.u32 %v1222, 4294901760
      %1224 = vmatmul.f32.gmra.mxu0 %v1223
      %v1225 = vpop.f32.mrf.mxu0
      %v1226 = vadd.f32 0.0, %v1225
      %v1227 = vand.u32 %v317, 4294901760
      %v1228 = vsub.f32 %v317, %v1227
      %v1229 = vand.u32 %v1228, 4294901760
      %v1230 = vsub.f32 %v1228, %v1229
      %v1231 = vand.u32 %v1230, 4294901760
      %1232 = vmatmul.f32.gmra.mxu0 %v1231
      %v1233 = vpop.f32.mrf.mxu0
      %v1234 = vadd.f32 0.0, %v1233
      %v1235 = vand.u32 %v320, 4294901760
      %v1236 = vsub.f32 %v320, %v1235
      %v1237 = vand.u32 %v1236, 4294901760
      %v1238 = vsub.f32 %v1236, %v1237
      %v1239 = vand.u32 %v1238, 4294901760
      %1240 = vmatmul.f32.gmra.mxu0 %v1239
      %v1241 = vpop.f32.mrf.mxu0
      %v1242 = vadd.f32 0.0, %v1241
      %v1243 = vand.u32 %v323, 4294901760
      %v1244 = vsub.f32 %v323, %v1243
      %v1245 = vand.u32 %v1244, 4294901760
      %v1246 = vsub.f32 %v1244, %v1245
      %v1247 = vand.u32 %v1246, 4294901760
      %1248 = vmatmul.f32.gmra.mxu0 %v1247
      %v1249 = vpop.f32.mrf.mxu0
      %v1250 = vadd.f32 0.0, %v1249
      %v1251 = vand.u32 %v326, 4294901760
      %v1252 = vsub.f32 %v326, %v1251
      %v1253 = vand.u32 %v1252, 4294901760
      %v1254 = vsub.f32 %v1252, %v1253
      %v1255 = vand.u32 %v1254, 4294901760
      %1256 = vmatmul.f32.gmra.mxu0 %v1255
      %v1257 = vpop.f32.mrf.mxu0
      %v1258 = vadd.f32 0.0, %v1257
      %v1259 = vand.u32 %v329, 4294901760
      %v1260 = vsub.f32 %v329, %v1259
      %v1261 = vand.u32 %v1260, 4294901760
      %v1262 = vsub.f32 %v1260, %v1261
      %v1263 = vand.u32 %v1262, 4294901760
      %1264 = vmatmul.f32.gmra.mxu0 %v1263
      %v1265 = vpop.f32.mrf.mxu0
      %v1266 = vadd.f32 0.0, %v1265
      %v1267 = vand.u32 %v332, 4294901760
      %v1268 = vsub.f32 %v332, %v1267
      %v1269 = vand.u32 %v1268, 4294901760
      %v1270 = vsub.f32 %v1268, %v1269
      %v1271 = vand.u32 %v1270, 4294901760
      %1272 = vmatmul.f32.gmra.mxu0 %v1271
      %v1273 = vpop.f32.mrf.mxu0
      %v1274 = vadd.f32 0.0, %v1273
      %v1275 = vand.u32 %v335, 4294901760
      %v1276 = vsub.f32 %v335, %v1275
      %v1277 = vand.u32 %v1276, 4294901760
      %v1278 = vsub.f32 %v1276, %v1277
      %v1279 = vand.u32 %v1278, 4294901760
      %1280 = vmatmul.f32.gmra.mxu0 %v1279
      %v1281 = vpop.f32.mrf.mxu0
      %v1282 = vadd.f32 0.0, %v1281
      %v1283 = vand.u32 %v338, 4294901760
      %v1284 = vsub.f32 %v338, %v1283
      %v1285 = vand.u32 %v1284, 4294901760
      %v1286 = vsub.f32 %v1284, %v1285
      %v1287 = vand.u32 %v1286, 4294901760
      %1288 = vmatmul.f32.gmra.mxu0 %v1287
      %v1289 = vpop.f32.mrf.mxu0
      %v1290 = vadd.f32 0.0, %v1289
      %v1291 = vand.u32 %v341, 4294901760
      %v1292 = vsub.f32 %v341, %v1291
      %v1293 = vand.u32 %v1292, 4294901760
      %v1294 = vsub.f32 %v1292, %v1293
      %v1295 = vand.u32 %v1294, 4294901760
      %1296 = vmatmul.f32.gmra.mxu0 %v1295
      %v1297 = vpop.f32.mrf.mxu0
      %v1298 = vadd.f32 0.0, %v1297
      %v1299 = vand.u32 %v344, 4294901760
      %v1300 = vsub.f32 %v344, %v1299
      %v1301 = vand.u32 %v1300, 4294901760
      %v1302 = vsub.f32 %v1300, %v1301
      %v1303 = vand.u32 %v1302, 4294901760
      %1304 = vmatmul.f32.gmra.mxu0 %v1303
      %v1305 = vpop.f32.mrf.mxu0
      %v1306 = vadd.f32 0.0, %v1305
      %v1307 = vand.u32 %v347, 4294901760
      %v1308 = vsub.f32 %v347, %v1307
      %v1309 = vand.u32 %v1308, 4294901760
      %v1310 = vsub.f32 %v1308, %v1309
      %v1311 = vand.u32 %v1310, 4294901760
      %1312 = vmatmul.f32.gmra.mxu0 %v1311
      %v1313 = vpop.f32.mrf.mxu0
      %v1314 = vadd.f32 0.0, %v1313
      %v1315 = vand.u32 %v350, 4294901760
      %v1316 = vsub.f32 %v350, %v1315
      %v1317 = vand.u32 %v1316, 4294901760
      %v1318 = vsub.f32 %v1316, %v1317
      %v1319 = vand.u32 %v1318, 4294901760
      %1320 = vmatmul.f32.gmra.mxu0 %v1319
      %v1321 = vpop.f32.mrf.mxu0
      %v1322 = vadd.f32 0.0, %v1321
      %v1323 = vand.u32 %v353, 4294901760
      %v1324 = vsub.f32 %v353, %v1323
      %v1325 = vand.u32 %v1324, 4294901760
      %v1326 = vsub.f32 %v1324, %v1325
      %v1327 = vand.u32 %v1326, 4294901760
      %1328 = vmatmul.f32.gmra.mxu0 %v1327
      %v1329 = vpop.f32.mrf.mxu0
      %v1330 = vadd.f32 0.0, %v1329
      %v1331 = vand.u32 %v356, 4294901760
      %v1332 = vsub.f32 %v356, %v1331
      %v1333 = vand.u32 %v1332, 4294901760
      %v1334 = vsub.f32 %v1332, %v1333
      %v1335 = vand.u32 %v1334, 4294901760
      %1336 = vmatmul.f32.gmra.mxu0 %v1335
      %v1337 = vpop.f32.mrf.mxu0
      %v1338 = vadd.f32 0.0, %v1337
      %v1339 = vand.u32 %v359, 4294901760
      %v1340 = vsub.f32 %v359, %v1339
      %v1341 = vand.u32 %v1340, 4294901760
      %v1342 = vsub.f32 %v1340, %v1341
      %v1343 = vand.u32 %v1342, 4294901760
      %1344 = vmatmul.f32.gmra.mxu0 %v1343
      %v1345 = vpop.f32.mrf.mxu0
      %v1346 = vadd.f32 0.0, %v1345
      %v1347 = vand.u32 %v362, 4294901760
      %v1348 = vsub.f32 %v362, %v1347
      %v1349 = vand.u32 %v1348, 4294901760
      %v1350 = vsub.f32 %v1348, %v1349
      %v1351 = vand.u32 %v1350, 4294901760
      %1352 = vmatmul.f32.gmra.mxu0 %v1351
      %v1353 = vpop.f32.mrf.mxu0
      %v1354 = vadd.f32 0.0, %v1353
      %v1355 = vand.u32 %v365, 4294901760
      %v1356 = vsub.f32 %v365, %v1355
      %v1357 = vand.u32 %v1356, 4294901760
      %v1358 = vsub.f32 %v1356, %v1357
      %v1359 = vand.u32 %v1358, 4294901760
      %1360 = vmatmul.f32.gmra.mxu0 %v1359
      %v1361 = vpop.f32.mrf.mxu0
      %v1362 = vadd.f32 0.0, %v1361
      %v1363 = vand.u32 %v368, 4294901760
      %v1364 = vsub.f32 %v368, %v1363
      %v1365 = vand.u32 %v1364, 4294901760
      %v1366 = vsub.f32 %v1364, %v1365
      %v1367 = vand.u32 %v1366, 4294901760
      %1368 = vmatmul.f32.gmra.mxu0 %v1367
      %v1369 = vpop.f32.mrf.mxu0
      %v1370 = vadd.f32 0.0, %v1369
      %v1371 = vand.u32 %v371, 4294901760
      %v1372 = vsub.f32 %v371, %v1371
      %v1373 = vand.u32 %v1372, 4294901760
      %v1374 = vsub.f32 %v1372, %v1373
      %v1375 = vand.u32 %v1374, 4294901760
      %1376 = vmatmul.f32.gmra.mxu0 %v1375
      %v1377 = vpop.f32.mrf.mxu0
      %v1378 = vadd.f32 0.0, %v1377
      %1379 = vdwg.mxu0
      %1380 = vmatpush.msra.mxu0 0.0
      %1381 = vmatpush.msra.mxu0 0.0
      %1382 = vmatpush.msra.mxu0 0.0
      %1383 = vmatpush.msra.mxu0 0.0
      %1384 = vmatpush.msra.mxu0 0.0
      %1385 = vmatpush.msra.mxu0 0.0
      %1386 = vmatpush.msra.mxu0 0.0
      %1387 = vmatpush.msra.mxu0 0.0
      %1388 = vmatpush.msra.mxu0 0.0
      %v1389 = vand.u32 %v378, 4294901760
      %v1390 = vsub.f32 %v378, %v1389
      %v1391 = vand.u32 %v1390, 4294901760
      %v1392 = vsub.f32 %v1390, %v1391
      %v1393 = vand.u32 %v1392, 4294901760
      %1394 = vmatpush.msra.mxu0 %v1393
      %v1395 = vand.u32 %v307, 4294901760
      %v1396 = vsub.f32 %v307, %v1395
      %v1397 = vand.u32 %v1396, 4294901760
      %v1398 = vsub.f32 %v1396, %v1397
      %v1399 = vand.u32 %v1398, 4294901760
      %1400 = vmatpush.msra.mxu0 %v1399
      %v1401 = vand.u32 %v304, 4294901760
      %v1402 = vsub.f32 %v304, %v1401
      %v1403 = vand.u32 %v1402, 4294901760
      %v1404 = vsub.f32 %v1402, %v1403
      %v1405 = vand.u32 %v1404, 4294901760
      %1406 = vmatpush.msra.mxu0 %v1405
      %v1407 = vand.u32 %v301, 4294901760
      %v1408 = vsub.f32 %v301, %v1407
      %v1409 = vand.u32 %v1408, 4294901760
      %v1410 = vsub.f32 %v1408, %v1409
      %v1411 = vand.u32 %v1410, 4294901760
      %1412 = vmatpush.msra.mxu0 %v1411
      %v1413 = vand.u32 %v298, 4294901760
      %v1414 = vsub.f32 %v298, %v1413
      %v1415 = vand.u32 %v1414, 4294901760
      %v1416 = vsub.f32 %v1414, %v1415
      %v1417 = vand.u32 %v1416, 4294901760
      %1418 = vmatpush.msra.mxu0 %v1417
      %v1419 = vand.u32 %v295, 4294901760
      %v1420 = vsub.f32 %v295, %v1419
      %v1421 = vand.u32 %v1420, 4294901760
      %v1422 = vsub.f32 %v1420, %v1421
      %v1423 = vand.u32 %v1422, 4294901760
      %1424 = vmatpush.msra.mxu0 %v1423
      %v1425 = vand.u32 %v292, 4294901760
      %v1426 = vsub.f32 %v292, %v1425
      %v1427 = vand.u32 %v1426, 4294901760
      %v1428 = vsub.f32 %v1426, %v1427
      %v1429 = vand.u32 %v1428, 4294901760
      %1430 = vmatpush.msra.mxu0 %v1429
      %v1431 = vand.u32 %v314, 4294901760
      %1432 = vmatmul.f32.gmra.mxu0 %v1431
      %v1433 = vpop.f32.mrf.mxu0
      %v1434 = vadd.f32 %v1226, %v1433
      %v1435 = vand.u32 %v317, 4294901760
      %1436 = vmatmul.f32.gmra.mxu0 %v1435
      %v1437 = vpop.f32.mrf.mxu0
      %v1438 = vadd.f32 %v1234, %v1437
      %v1439 = vand.u32 %v320, 4294901760
      %1440 = vmatmul.f32.gmra.mxu0 %v1439
      %v1441 = vpop.f32.mrf.mxu0
      %v1442 = vadd.f32 %v1242, %v1441
      %v1443 = vand.u32 %v323, 4294901760
      %1444 = vmatmul.f32.gmra.mxu0 %v1443
      %v1445 = vpop.f32.mrf.mxu0
      %v1446 = vadd.f32 %v1250, %v1445
      %v1447 = vand.u32 %v326, 4294901760
      %1448 = vmatmul.f32.gmra.mxu0 %v1447
      %v1449 = vpop.f32.mrf.mxu0
      %v1450 = vadd.f32 %v1258, %v1449
      %v1451 = vand.u32 %v329, 4294901760
      %1452 = vmatmul.f32.gmra.mxu0 %v1451
      %v1453 = vpop.f32.mrf.mxu0
      %v1454 = vadd.f32 %v1266, %v1453
      %v1455 = vand.u32 %v332, 4294901760
      %1456 = vmatmul.f32.gmra.mxu0 %v1455
      %v1457 = vpop.f32.mrf.mxu0
      %v1458 = vadd.f32 %v1274, %v1457
      %v1459 = vand.u32 %v335, 4294901760
      %1460 = vmatmul.f32.gmra.mxu0 %v1459
      %v1461 = vpop.f32.mrf.mxu0
      %v1462 = vadd.f32 %v1282, %v1461
      %v1463 = vand.u32 %v338, 4294901760
      %1464 = vmatmul.f32.gmra.mxu0 %v1463
      %v1465 = vpop.f32.mrf.mxu0
      %v1466 = vadd.f32 %v1290, %v1465
      %v1467 = vand.u32 %v341, 4294901760
      %1468 = vmatmul.f32.gmra.mxu0 %v1467
      %v1469 = vpop.f32.mrf.mxu0
      %v1470 = vadd.f32 %v1298, %v1469
      %v1471 = vand.u32 %v344, 4294901760
      %1472 = vmatmul.f32.gmra.mxu0 %v1471
      %v1473 = vpop.f32.mrf.mxu0
      %v1474 = vadd.f32 %v1306, %v1473
      %v1475 = vand.u32 %v347, 4294901760
      %1476 = vmatmul.f32.gmra.mxu0 %v1475
      %v1477 = vpop.f32.mrf.mxu0
      %v1478 = vadd.f32 %v1314, %v1477
      %v1479 = vand.u32 %v350, 4294901760
      %1480 = vmatmul.f32.gmra.mxu0 %v1479
      %v1481 = vpop.f32.mrf.mxu0
      %v1482 = vadd.f32 %v1322, %v1481
      %v1483 = vand.u32 %v353, 4294901760
      %1484 = vmatmul.f32.gmra.mxu0 %v1483
      %v1485 = vpop.f32.mrf.mxu0
      %v1486 = vadd.f32 %v1330, %v1485
      %v1487 = vand.u32 %v356, 4294901760
      %1488 = vmatmul.f32.gmra.mxu0 %v1487
      %v1489 = vpop.f32.mrf.mxu0
      %v1490 = vadd.f32 %v1338, %v1489
      %v1491 = vand.u32 %v359, 4294901760
      %1492 = vmatmul.f32.gmra.mxu0 %v1491
      %v1493 = vpop.f32.mrf.mxu0
      %v1494 = vadd.f32 %v1346, %v1493
      %v1495 = vand.u32 %v362, 4294901760
      %1496 = vmatmul.f32.gmra.mxu0 %v1495
      %v1497 = vpop.f32.mrf.mxu0
      %v1498 = vadd.f32 %v1354, %v1497
      %v1499 = vand.u32 %v365, 4294901760
      %1500 = vmatmul.f32.gmra.mxu0 %v1499
      %v1501 = vpop.f32.mrf.mxu0
      %v1502 = vadd.f32 %v1362, %v1501
      %v1503 = vand.u32 %v368, 4294901760
      %1504 = vmatmul.f32.gmra.mxu0 %v1503
      %v1505 = vpop.f32.mrf.mxu0
      %v1506 = vadd.f32 %v1370, %v1505
      %v1507 = vand.u32 %v371, 4294901760
      %1508 = vmatmul.f32.gmra.mxu0 %v1507
      %v1509 = vpop.f32.mrf.mxu0
      %v1510 = vadd.f32 %v1378, %v1509
      %1511 = vdwg.mxu0
      %1512 = vmatpush.msra.mxu0 0.0
      %1513 = vmatpush.msra.mxu0 0.0
      %1514 = vmatpush.msra.mxu0 0.0
      %1515 = vmatpush.msra.mxu0 0.0
      %1516 = vmatpush.msra.mxu0 0.0
      %1517 = vmatpush.msra.mxu0 0.0
      %1518 = vmatpush.msra.mxu0 0.0
      %1519 = vmatpush.msra.mxu0 0.0
      %1520 = vmatpush.msra.mxu0 0.0
      %v1521 = vand.u32 %v378, 4294901760
      %v1522 = vsub.f32 %v378, %v1521
      %1523 = vmatpush.msra.mxu0 %v1522
      %v1524 = vand.u32 %v307, 4294901760
      %v1525 = vsub.f32 %v307, %v1524
      %1526 = vmatpush.msra.mxu0 %v1525
      %v1527 = vand.u32 %v304, 4294901760
      %v1528 = vsub.f32 %v304, %v1527
      %1529 = vmatpush.msra.mxu0 %v1528
      %v1530 = vand.u32 %v301, 4294901760
      %v1531 = vsub.f32 %v301, %v1530
      %1532 = vmatpush.msra.mxu0 %v1531
      %v1533 = vand.u32 %v298, 4294901760
      %v1534 = vsub.f32 %v298, %v1533
      %1535 = vmatpush.msra.mxu0 %v1534
      %v1536 = vand.u32 %v295, 4294901760
      %v1537 = vsub.f32 %v295, %v1536
      %1538 = vmatpush.msra.mxu0 %v1537
      %v1539 = vand.u32 %v292, 4294901760
      %v1540 = vsub.f32 %v292, %v1539
      %1541 = vmatpush.msra.mxu0 %v1540
      %v1542 = vand.u32 %v314, 4294901760
      %v1543 = vsub.f32 %v314, %v1542
      %1544 = vmatmul.f32.gmra.mxu0 %v1543
      %v1545 = vpop.f32.mrf.mxu0
      %v1546 = vadd.f32 %v1434, %v1545
      %v1547 = vand.u32 %v317, 4294901760
      %v1548 = vsub.f32 %v317, %v1547
      %1549 = vmatmul.f32.gmra.mxu0 %v1548
      %v1550 = vpop.f32.mrf.mxu0
      %v1551 = vadd.f32 %v1438, %v1550
      %v1552 = vand.u32 %v320, 4294901760
      %v1553 = vsub.f32 %v320, %v1552
      %1554 = vmatmul.f32.gmra.mxu0 %v1553
      %v1555 = vpop.f32.mrf.mxu0
      %v1556 = vadd.f32 %v1442, %v1555
      %v1557 = vand.u32 %v323, 4294901760
      %v1558 = vsub.f32 %v323, %v1557
      %1559 = vmatmul.f32.gmra.mxu0 %v1558
      %v1560 = vpop.f32.mrf.mxu0
      %v1561 = vadd.f32 %v1446, %v1560
      %v1562 = vand.u32 %v326, 4294901760
      %v1563 = vsub.f32 %v326, %v1562
      %1564 = vmatmul.f32.gmra.mxu0 %v1563
      %v1565 = vpop.f32.mrf.mxu0
      %v1566 = vadd.f32 %v1450, %v1565
      %v1567 = vand.u32 %v329, 4294901760
      %v1568 = vsub.f32 %v329, %v1567
      %1569 = vmatmul.f32.gmra.mxu0 %v1568
      %v1570 = vpop.f32.mrf.mxu0
      %v1571 = vadd.f32 %v1454, %v1570
      %v1572 = vand.u32 %v332, 4294901760
      %v1573 = vsub.f32 %v332, %v1572
      %1574 = vmatmul.f32.gmra.mxu0 %v1573
      %v1575 = vpop.f32.mrf.mxu0
      %v1576 = vadd.f32 %v1458, %v1575
      %v1577 = vand.u32 %v335, 4294901760
      %v1578 = vsub.f32 %v335, %v1577
      %1579 = vmatmul.f32.gmra.mxu0 %v1578
      %v1580 = vpop.f32.mrf.mxu0
      %v1581 = vadd.f32 %v1462, %v1580
      %v1582 = vand.u32 %v338, 4294901760
      %v1583 = vsub.f32 %v338, %v1582
      %1584 = vmatmul.f32.gmra.mxu0 %v1583
      %v1585 = vpop.f32.mrf.mxu0
      %v1586 = vadd.f32 %v1466, %v1585
      %v1587 = vand.u32 %v341, 4294901760
      %v1588 = vsub.f32 %v341, %v1587
      %1589 = vmatmul.f32.gmra.mxu0 %v1588
      %v1590 = vpop.f32.mrf.mxu0
      %v1591 = vadd.f32 %v1470, %v1590
      %v1592 = vand.u32 %v344, 4294901760
      %v1593 = vsub.f32 %v344, %v1592
      %1594 = vmatmul.f32.gmra.mxu0 %v1593
      %v1595 = vpop.f32.mrf.mxu0
      %v1596 = vadd.f32 %v1474, %v1595
      %v1597 = vand.u32 %v347, 4294901760
      %v1598 = vsub.f32 %v347, %v1597
      %1599 = vmatmul.f32.gmra.mxu0 %v1598
      %v1600 = vpop.f32.mrf.mxu0
      %v1601 = vadd.f32 %v1478, %v1600
      %v1602 = vand.u32 %v350, 4294901760
      %v1603 = vsub.f32 %v350, %v1602
      %1604 = vmatmul.f32.gmra.mxu0 %v1603
      %v1605 = vpop.f32.mrf.mxu0
      %v1606 = vadd.f32 %v1482, %v1605
      %v1607 = vand.u32 %v353, 4294901760
      %v1608 = vsub.f32 %v353, %v1607
      %1609 = vmatmul.f32.gmra.mxu0 %v1608
      %v1610 = vpop.f32.mrf.mxu0
      %v1611 = vadd.f32 %v1486, %v1610
      %v1612 = vand.u32 %v356, 4294901760
      %v1613 = vsub.f32 %v356, %v1612
      %1614 = vmatmul.f32.gmra.mxu0 %v1613
      %v1615 = vpop.f32.mrf.mxu0
      %v1616 = vadd.f32 %v1490, %v1615
      %v1617 = vand.u32 %v359, 4294901760
      %v1618 = vsub.f32 %v359, %v1617
      %1619 = vmatmul.f32.gmra.mxu0 %v1618
      %v1620 = vpop.f32.mrf.mxu0
      %v1621 = vadd.f32 %v1494, %v1620
      %v1622 = vand.u32 %v362, 4294901760
      %v1623 = vsub.f32 %v362, %v1622
      %1624 = vmatmul.f32.gmra.mxu0 %v1623
      %v1625 = vpop.f32.mrf.mxu0
      %v1626 = vadd.f32 %v1498, %v1625
      %v1627 = vand.u32 %v365, 4294901760
      %v1628 = vsub.f32 %v365, %v1627
      %1629 = vmatmul.f32.gmra.mxu0 %v1628
      %v1630 = vpop.f32.mrf.mxu0
      %v1631 = vadd.f32 %v1502, %v1630
      %v1632 = vand.u32 %v368, 4294901760
      %v1633 = vsub.f32 %v368, %v1632
      %1634 = vmatmul.f32.gmra.mxu0 %v1633
      %v1635 = vpop.f32.mrf.mxu0
      %v1636 = vadd.f32 %v1506, %v1635
      %v1637 = vand.u32 %v371, 4294901760
      %v1638 = vsub.f32 %v371, %v1637
      %1639 = vmatmul.f32.gmra.mxu0 %v1638
      %v1640 = vpop.f32.mrf.mxu0
      %v1641 = vadd.f32 %v1510, %v1640
      %1642 = vdwg.mxu0
      %1643 = vmatpush.msra.mxu0 0.0
      %1644 = vmatpush.msra.mxu0 0.0
      %1645 = vmatpush.msra.mxu0 0.0
      %1646 = vmatpush.msra.mxu0 0.0
      %1647 = vmatpush.msra.mxu0 0.0
      %1648 = vmatpush.msra.mxu0 0.0
      %1649 = vmatpush.msra.mxu0 0.0
      %1650 = vmatpush.msra.mxu0 0.0
      %1651 = vmatpush.msra.mxu0 0.0
      %v1652 = vand.u32 %v378, 4294901760
      %1653 = vmatpush.msra.mxu0 %v1652
      %v1654 = vand.u32 %v307, 4294901760
      %1655 = vmatpush.msra.mxu0 %v1654
      %v1656 = vand.u32 %v304, 4294901760
      %1657 = vmatpush.msra.mxu0 %v1656
      %v1658 = vand.u32 %v301, 4294901760
      %1659 = vmatpush.msra.mxu0 %v1658
      %v1660 = vand.u32 %v298, 4294901760
      %1661 = vmatpush.msra.mxu0 %v1660
      %v1662 = vand.u32 %v295, 4294901760
      %1663 = vmatpush.msra.mxu0 %v1662
      %v1664 = vand.u32 %v292, 4294901760
      %1665 = vmatpush.msra.mxu0 %v1664
      %v1666 = vand.u32 %v314, 4294901760
      %v1667 = vsub.f32 %v314, %v1666
      %v1668 = vand.u32 %v1667, 4294901760
      %1669 = vmatmul.f32.gmra.mxu0 %v1668
      %v1670 = vpop.f32.mrf.mxu0
      %v1671 = vadd.f32 %v1546, %v1670
      %v1672 = vand.u32 %v317, 4294901760
      %v1673 = vsub.f32 %v317, %v1672
      %v1674 = vand.u32 %v1673, 4294901760
      %1675 = vmatmul.f32.gmra.mxu0 %v1674
      %v1676 = vpop.f32.mrf.mxu0
      %v1677 = vadd.f32 %v1551, %v1676
      %v1678 = vand.u32 %v320, 4294901760
      %v1679 = vsub.f32 %v320, %v1678
      %v1680 = vand.u32 %v1679, 4294901760
      %1681 = vmatmul.f32.gmra.mxu0 %v1680
      %v1682 = vpop.f32.mrf.mxu0
      %v1683 = vadd.f32 %v1556, %v1682
      %v1684 = vand.u32 %v323, 4294901760
      %v1685 = vsub.f32 %v323, %v1684
      %v1686 = vand.u32 %v1685, 4294901760
      %1687 = vmatmul.f32.gmra.mxu0 %v1686
      %v1688 = vpop.f32.mrf.mxu0
      %v1689 = vadd.f32 %v1561, %v1688
      %v1690 = vand.u32 %v326, 4294901760
      %v1691 = vsub.f32 %v326, %v1690
      %v1692 = vand.u32 %v1691, 4294901760
      %1693 = vmatmul.f32.gmra.mxu0 %v1692
      %v1694 = vpop.f32.mrf.mxu0
      %v1695 = vadd.f32 %v1566, %v1694
      %v1696 = vand.u32 %v329, 4294901760
      %v1697 = vsub.f32 %v329, %v1696
      %v1698 = vand.u32 %v1697, 4294901760
      %1699 = vmatmul.f32.gmra.mxu0 %v1698
      %v1700 = vpop.f32.mrf.mxu0
      %v1701 = vadd.f32 %v1571, %v1700
      %v1702 = vand.u32 %v332, 4294901760
      %v1703 = vsub.f32 %v332, %v1702
      %v1704 = vand.u32 %v1703, 4294901760
      %1705 = vmatmul.f32.gmra.mxu0 %v1704
      %v1706 = vpop.f32.mrf.mxu0
      %v1707 = vadd.f32 %v1576, %v1706
      %v1708 = vand.u32 %v335, 4294901760
      %v1709 = vsub.f32 %v335, %v1708
      %v1710 = vand.u32 %v1709, 4294901760
      %1711 = vmatmul.f32.gmra.mxu0 %v1710
      %v1712 = vpop.f32.mrf.mxu0
      %v1713 = vadd.f32 %v1581, %v1712
      %v1714 = vand.u32 %v338, 4294901760
      %v1715 = vsub.f32 %v338, %v1714
      %v1716 = vand.u32 %v1715, 4294901760
      %1717 = vmatmul.f32.gmra.mxu0 %v1716
      %v1718 = vpop.f32.mrf.mxu0
      %v1719 = vadd.f32 %v1586, %v1718
      %v1720 = vand.u32 %v341, 4294901760
      %v1721 = vsub.f32 %v341, %v1720
      %v1722 = vand.u32 %v1721, 4294901760
      %1723 = vmatmul.f32.gmra.mxu0 %v1722
      %v1724 = vpop.f32.mrf.mxu0
      %v1725 = vadd.f32 %v1591, %v1724
      %v1726 = vand.u32 %v344, 4294901760
      %v1727 = vsub.f32 %v344, %v1726
      %v1728 = vand.u32 %v1727, 4294901760
      %1729 = vmatmul.f32.gmra.mxu0 %v1728
      %v1730 = vpop.f32.mrf.mxu0
      %v1731 = vadd.f32 %v1596, %v1730
      %v1732 = vand.u32 %v347, 4294901760
      %v1733 = vsub.f32 %v347, %v1732
      %v1734 = vand.u32 %v1733, 4294901760
      %1735 = vmatmul.f32.gmra.mxu0 %v1734
      %v1736 = vpop.f32.mrf.mxu0
      %v1737 = vadd.f32 %v1601, %v1736
      %v1738 = vand.u32 %v350, 4294901760
      %v1739 = vsub.f32 %v350, %v1738
      %v1740 = vand.u32 %v1739, 4294901760
      %1741 = vmatmul.f32.gmra.mxu0 %v1740
      %v1742 = vpop.f32.mrf.mxu0
      %v1743 = vadd.f32 %v1606, %v1742
      %v1744 = vand.u32 %v353, 4294901760
      %v1745 = vsub.f32 %v353, %v1744
      %v1746 = vand.u32 %v1745, 4294901760
      %1747 = vmatmul.f32.gmra.mxu0 %v1746
      %v1748 = vpop.f32.mrf.mxu0
      %v1749 = vadd.f32 %v1611, %v1748
      %v1750 = vand.u32 %v356, 4294901760
      %v1751 = vsub.f32 %v356, %v1750
      %v1752 = vand.u32 %v1751, 4294901760
      %1753 = vmatmul.f32.gmra.mxu0 %v1752
      %v1754 = vpop.f32.mrf.mxu0
      %v1755 = vadd.f32 %v1616, %v1754
      %v1756 = vand.u32 %v359, 4294901760
      %v1757 = vsub.f32 %v359, %v1756
      %v1758 = vand.u32 %v1757, 4294901760
      %1759 = vmatmul.f32.gmra.mxu0 %v1758
      %v1760 = vpop.f32.mrf.mxu0
      %v1761 = vadd.f32 %v1621, %v1760
      %v1762 = vand.u32 %v362, 4294901760
      %v1763 = vsub.f32 %v362, %v1762
      %v1764 = vand.u32 %v1763, 4294901760
      %1765 = vmatmul.f32.gmra.mxu0 %v1764
      %v1766 = vpop.f32.mrf.mxu0
      %v1767 = vadd.f32 %v1626, %v1766
      %v1768 = vand.u32 %v365, 4294901760
      %v1769 = vsub.f32 %v365, %v1768
      %v1770 = vand.u32 %v1769, 4294901760
      %1771 = vmatmul.f32.gmra.mxu0 %v1770
      %v1772 = vpop.f32.mrf.mxu0
      %v1773 = vadd.f32 %v1631, %v1772
      %v1774 = vand.u32 %v368, 4294901760
      %v1775 = vsub.f32 %v368, %v1774
      %v1776 = vand.u32 %v1775, 4294901760
      %1777 = vmatmul.f32.gmra.mxu0 %v1776
      %v1778 = vpop.f32.mrf.mxu0
      %v1779 = vadd.f32 %v1636, %v1778
      %v1780 = vand.u32 %v371, 4294901760
      %v1781 = vsub.f32 %v371, %v1780
      %v1782 = vand.u32 %v1781, 4294901760
      %1783 = vmatmul.f32.gmra.mxu0 %v1782
      %v1784 = vpop.f32.mrf.mxu0
      %v1785 = vadd.f32 %v1641, %v1784
      %1786 = vdwg.mxu0
      %1787 = vmatpush.msra.mxu0 0.0
      %1788 = vmatpush.msra.mxu0 0.0
      %1789 = vmatpush.msra.mxu0 0.0
      %1790 = vmatpush.msra.mxu0 0.0
      %1791 = vmatpush.msra.mxu0 0.0
      %1792 = vmatpush.msra.mxu0 0.0
      %1793 = vmatpush.msra.mxu0 0.0
      %1794 = vmatpush.msra.mxu0 0.0
      %1795 = vmatpush.msra.mxu0 0.0
      %v1796 = vand.u32 %v378, 4294901760
      %v1797 = vsub.f32 %v378, %v1796
      %v1798 = vand.u32 %v1797, 4294901760
      %1799 = vmatpush.msra.mxu0 %v1798
      %v1800 = vand.u32 %v307, 4294901760
      %v1801 = vsub.f32 %v307, %v1800
      %v1802 = vand.u32 %v1801, 4294901760
      %1803 = vmatpush.msra.mxu0 %v1802
      %v1804 = vand.u32 %v304, 4294901760
      %v1805 = vsub.f32 %v304, %v1804
      %v1806 = vand.u32 %v1805, 4294901760
      %1807 = vmatpush.msra.mxu0 %v1806
      %v1808 = vand.u32 %v301, 4294901760
      %v1809 = vsub.f32 %v301, %v1808
      %v1810 = vand.u32 %v1809, 4294901760
      %1811 = vmatpush.msra.mxu0 %v1810
      %v1812 = vand.u32 %v298, 4294901760
      %v1813 = vsub.f32 %v298, %v1812
      %v1814 = vand.u32 %v1813, 4294901760
      %1815 = vmatpush.msra.mxu0 %v1814
      %v1816 = vand.u32 %v295, 4294901760
      %v1817 = vsub.f32 %v295, %v1816
      %v1818 = vand.u32 %v1817, 4294901760
      %1819 = vmatpush.msra.mxu0 %v1818
      %v1820 = vand.u32 %v292, 4294901760
      %v1821 = vsub.f32 %v292, %v1820
      %v1822 = vand.u32 %v1821, 4294901760
      %1823 = vmatpush.msra.mxu0 %v1822
      %v1824 = vand.u32 %v314, 4294901760
      %1825 = vmatmul.f32.gmra.mxu0 %v1824
      %v1826 = vpop.f32.mrf.mxu0
      %v1827 = vadd.f32 %v1671, %v1826
      %v1828 = vand.u32 %v317, 4294901760
      %1829 = vmatmul.f32.gmra.mxu0 %v1828
      %v1830 = vpop.f32.mrf.mxu0
      %v1831 = vadd.f32 %v1677, %v1830
      %v1832 = vand.u32 %v320, 4294901760
      %1833 = vmatmul.f32.gmra.mxu0 %v1832
      %v1834 = vpop.f32.mrf.mxu0
      %v1835 = vadd.f32 %v1683, %v1834
      %v1836 = vand.u32 %v323, 4294901760
      %1837 = vmatmul.f32.gmra.mxu0 %v1836
      %v1838 = vpop.f32.mrf.mxu0
      %v1839 = vadd.f32 %v1689, %v1838
      %v1840 = vand.u32 %v326, 4294901760
      %1841 = vmatmul.f32.gmra.mxu0 %v1840
      %v1842 = vpop.f32.mrf.mxu0
      %v1843 = vadd.f32 %v1695, %v1842
      %v1844 = vand.u32 %v329, 4294901760
      %1845 = vmatmul.f32.gmra.mxu0 %v1844
      %v1846 = vpop.f32.mrf.mxu0
      %v1847 = vadd.f32 %v1701, %v1846
      %v1848 = vand.u32 %v332, 4294901760
      %1849 = vmatmul.f32.gmra.mxu0 %v1848
      %v1850 = vpop.f32.mrf.mxu0
      %v1851 = vadd.f32 %v1707, %v1850
      %v1852 = vand.u32 %v335, 4294901760
      %1853 = vmatmul.f32.gmra.mxu0 %v1852
      %v1854 = vpop.f32.mrf.mxu0
      %v1855 = vadd.f32 %v1713, %v1854
      %v1856 = vand.u32 %v338, 4294901760
      %1857 = vmatmul.f32.gmra.mxu0 %v1856
      %v1858 = vpop.f32.mrf.mxu0
      %v1859 = vadd.f32 %v1719, %v1858
      %v1860 = vand.u32 %v341, 4294901760
      %1861 = vmatmul.f32.gmra.mxu0 %v1860
      %v1862 = vpop.f32.mrf.mxu0
      %v1863 = vadd.f32 %v1725, %v1862
      %v1864 = vand.u32 %v344, 4294901760
      %1865 = vmatmul.f32.gmra.mxu0 %v1864
      %v1866 = vpop.f32.mrf.mxu0
      %v1867 = vadd.f32 %v1731, %v1866
      %v1868 = vand.u32 %v347, 4294901760
      %1869 = vmatmul.f32.gmra.mxu0 %v1868
      %v1870 = vpop.f32.mrf.mxu0
      %v1871 = vadd.f32 %v1737, %v1870
      %v1872 = vand.u32 %v350, 4294901760
      %1873 = vmatmul.f32.gmra.mxu0 %v1872
      %v1874 = vpop.f32.mrf.mxu0
      %v1875 = vadd.f32 %v1743, %v1874
      %v1876 = vand.u32 %v353, 4294901760
      %1877 = vmatmul.f32.gmra.mxu0 %v1876
      %v1878 = vpop.f32.mrf.mxu0
      %v1879 = vadd.f32 %v1749, %v1878
      %v1880 = vand.u32 %v356, 4294901760
      %1881 = vmatmul.f32.gmra.mxu0 %v1880
      %v1882 = vpop.f32.mrf.mxu0
      %v1883 = vadd.f32 %v1755, %v1882
      %v1884 = vand.u32 %v359, 4294901760
      %1885 = vmatmul.f32.gmra.mxu0 %v1884
      %v1886 = vpop.f32.mrf.mxu0
      %v1887 = vadd.f32 %v1761, %v1886
      %v1888 = vand.u32 %v362, 4294901760
      %1889 = vmatmul.f32.gmra.mxu0 %v1888
      %v1890 = vpop.f32.mrf.mxu0
      %v1891 = vadd.f32 %v1767, %v1890
      %v1892 = vand.u32 %v365, 4294901760
      %1893 = vmatmul.f32.gmra.mxu0 %v1892
      %v1894 = vpop.f32.mrf.mxu0
      %v1895 = vadd.f32 %v1773, %v1894
      %v1896 = vand.u32 %v368, 4294901760
      %1897 = vmatmul.f32.gmra.mxu0 %v1896
      %v1898 = vpop.f32.mrf.mxu0
      %v1899 = vadd.f32 %v1779, %v1898
      %v1900 = vand.u32 %v371, 4294901760
      %1901 = vmatmul.f32.gmra.mxu0 %v1900
      %v1902 = vpop.f32.mrf.mxu0
      %v1903 = vadd.f32 %v1785, %v1902
      %1904 = vdwg.mxu0
      %1905 = vmatpush.msra.mxu0 0.0
      %1906 = vmatpush.msra.mxu0 0.0
      %1907 = vmatpush.msra.mxu0 0.0
      %1908 = vmatpush.msra.mxu0 0.0
      %1909 = vmatpush.msra.mxu0 0.0
      %1910 = vmatpush.msra.mxu0 0.0
      %1911 = vmatpush.msra.mxu0 0.0
      %1912 = vmatpush.msra.mxu0 0.0
      %1913 = vmatpush.msra.mxu0 0.0
      %v1914 = vand.u32 %v378, 4294901760
      %1915 = vmatpush.msra.mxu0 %v1914
      %v1916 = vand.u32 %v307, 4294901760
      %1917 = vmatpush.msra.mxu0 %v1916
      %v1918 = vand.u32 %v304, 4294901760
      %1919 = vmatpush.msra.mxu0 %v1918
      %v1920 = vand.u32 %v301, 4294901760
      %1921 = vmatpush.msra.mxu0 %v1920
      %v1922 = vand.u32 %v298, 4294901760
      %1923 = vmatpush.msra.mxu0 %v1922
      %v1924 = vand.u32 %v295, 4294901760
      %1925 = vmatpush.msra.mxu0 %v1924
      %v1926 = vand.u32 %v292, 4294901760
      %1927 = vmatpush.msra.mxu0 %v1926
      %v1928 = vand.u32 %v314, 4294901760
      %1929 = vmatmul.f32.gmra.mxu0 %v1928
      %v1930 = vpop.f32.mrf.mxu0
      %v1931 = vadd.f32 %v1827, %v1930
      %v1932 = vand.u32 %v317, 4294901760
      %1933 = vmatmul.f32.gmra.mxu0 %v1932
      %v1934 = vpop.f32.mrf.mxu0
      %v1935 = vadd.f32 %v1831, %v1934
      %v1936 = vand.u32 %v320, 4294901760
      %1937 = vmatmul.f32.gmra.mxu0 %v1936
      %v1938 = vpop.f32.mrf.mxu0
      %v1939 = vadd.f32 %v1835, %v1938
      %v1940 = vand.u32 %v323, 4294901760
      %1941 = vmatmul.f32.gmra.mxu0 %v1940
      %v1942 = vpop.f32.mrf.mxu0
      %v1943 = vadd.f32 %v1839, %v1942
      %v1944 = vand.u32 %v326, 4294901760
      %1945 = vmatmul.f32.gmra.mxu0 %v1944
      %v1946 = vpop.f32.mrf.mxu0
      %v1947 = vadd.f32 %v1843, %v1946
      %v1948 = vand.u32 %v329, 4294901760
      %1949 = vmatmul.f32.gmra.mxu0 %v1948
      %v1950 = vpop.f32.mrf.mxu0
      %v1951 = vadd.f32 %v1847, %v1950
      %v1952 = vand.u32 %v332, 4294901760
      %1953 = vmatmul.f32.gmra.mxu0 %v1952
      %v1954 = vpop.f32.mrf.mxu0
      %v1955 = vadd.f32 %v1851, %v1954
      %v1956 = vand.u32 %v335, 4294901760
      %1957 = vmatmul.f32.gmra.mxu0 %v1956
      %v1958 = vpop.f32.mrf.mxu0
      %v1959 = vadd.f32 %v1855, %v1958
      %v1960 = vand.u32 %v338, 4294901760
      %1961 = vmatmul.f32.gmra.mxu0 %v1960
      %v1962 = vpop.f32.mrf.mxu0
      %v1963 = vadd.f32 %v1859, %v1962
      %v1964 = vand.u32 %v341, 4294901760
      %1965 = vmatmul.f32.gmra.mxu0 %v1964
      %v1966 = vpop.f32.mrf.mxu0
      %v1967 = vadd.f32 %v1863, %v1966
      %v1968 = vand.u32 %v344, 4294901760
      %1969 = vmatmul.f32.gmra.mxu0 %v1968
      %v1970 = vpop.f32.mrf.mxu0
      %v1971 = vadd.f32 %v1867, %v1970
      %v1972 = vand.u32 %v347, 4294901760
      %1973 = vmatmul.f32.gmra.mxu0 %v1972
      %v1974 = vpop.f32.mrf.mxu0
      %v1975 = vadd.f32 %v1871, %v1974
      %v1976 = vand.u32 %v350, 4294901760
      %1977 = vmatmul.f32.gmra.mxu0 %v1976
      %v1978 = vpop.f32.mrf.mxu0
      %v1979 = vadd.f32 %v1875, %v1978
      %v1980 = vand.u32 %v353, 4294901760
      %1981 = vmatmul.f32.gmra.mxu0 %v1980
      %v1982 = vpop.f32.mrf.mxu0
      %v1983 = vadd.f32 %v1879, %v1982
      %v1984 = vand.u32 %v356, 4294901760
      %1985 = vmatmul.f32.gmra.mxu0 %v1984
      %v1986 = vpop.f32.mrf.mxu0
      %v1987 = vadd.f32 %v1883, %v1986
      %v1988 = vand.u32 %v359, 4294901760
      %1989 = vmatmul.f32.gmra.mxu0 %v1988
      %v1990 = vpop.f32.mrf.mxu0
      %v1991 = vadd.f32 %v1887, %v1990
      %v1992 = vand.u32 %v362, 4294901760
      %1993 = vmatmul.f32.gmra.mxu0 %v1992
      %v1994 = vpop.f32.mrf.mxu0
      %v1995 = vadd.f32 %v1891, %v1994
      %v1996 = vand.u32 %v365, 4294901760
      %1997 = vmatmul.f32.gmra.mxu0 %v1996
      %v1998 = vpop.f32.mrf.mxu0
      %v1999 = vadd.f32 %v1895, %v1998
      %v2000 = vand.u32 %v368, 4294901760
      %2001 = vmatmul.f32.gmra.mxu0 %v2000
      %v2002 = vpop.f32.mrf.mxu0
      %v2003 = vadd.f32 %v1899, %v2002
      %v2004 = vand.u32 %v371, 4294901760
      %2005 = vmatmul.f32.gmra.mxu0 %v2004
      %v2006 = vpop.f32.mrf.mxu0
      %v2007 = vadd.f32 %v1903, %v2006
      %2008 = vdwg.mxu0
      %2009 = vmatpush.msra.mxu0 0.0
      %2010 = vmatpush.msra.mxu0 0.0
      %2011 = vmatpush.msra.mxu0 0.0
      %2012 = vmatpush.msra.mxu0 0.0
      %2013 = vmatpush.msra.mxu0 0.0
      %2014 = vmatpush.msra.mxu0 0.0
      %2015 = vmatpush.msra.mxu0 0.0
      %2016 = vmatpush.msra.mxu0 0.0
      %2017 = vmatpush.msra.mxu0 0.0
      %v2018 = vand.u32 %v381, 4294901760
      %2019 = vmatpush.msra.mxu0 %v2018
      %v2020 = vand.u32 %v308, 4294901760
      %2021 = vmatpush.msra.mxu0 %v2020
      %v2022 = vand.u32 %v305, 4294901760
      %2023 = vmatpush.msra.mxu0 %v2022
      %v2024 = vand.u32 %v302, 4294901760
      %2025 = vmatpush.msra.mxu0 %v2024
      %v2026 = vand.u32 %v299, 4294901760
      %2027 = vmatpush.msra.mxu0 %v2026
      %v2028 = vand.u32 %v296, 4294901760
      %2029 = vmatpush.msra.mxu0 %v2028
      %v2030 = vand.u32 %v293, 4294901760
      %2031 = vmatpush.msra.mxu0 %v2030
      %v2032 = vand.u32 %v314, 4294901760
      %v2033 = vsub.f32 %v314, %v2032
      %v2034 = vand.u32 %v2033, 4294901760
      %v2035 = vsub.f32 %v2033, %v2034
      %v2036 = vand.u32 %v2035, 4294901760
      %2037 = vmatmul.f32.gmra.mxu0 %v2036
      %v2038 = vpop.f32.mrf.mxu0
      %v2039 = vadd.f32 0.0, %v2038
      %v2040 = vand.u32 %v317, 4294901760
      %v2041 = vsub.f32 %v317, %v2040
      %v2042 = vand.u32 %v2041, 4294901760
      %v2043 = vsub.f32 %v2041, %v2042
      %v2044 = vand.u32 %v2043, 4294901760
      %2045 = vmatmul.f32.gmra.mxu0 %v2044
      %v2046 = vpop.f32.mrf.mxu0
      %v2047 = vadd.f32 0.0, %v2046
      %v2048 = vand.u32 %v320, 4294901760
      %v2049 = vsub.f32 %v320, %v2048
      %v2050 = vand.u32 %v2049, 4294901760
      %v2051 = vsub.f32 %v2049, %v2050
      %v2052 = vand.u32 %v2051, 4294901760
      %2053 = vmatmul.f32.gmra.mxu0 %v2052
      %v2054 = vpop.f32.mrf.mxu0
      %v2055 = vadd.f32 0.0, %v2054
      %v2056 = vand.u32 %v323, 4294901760
      %v2057 = vsub.f32 %v323, %v2056
      %v2058 = vand.u32 %v2057, 4294901760
      %v2059 = vsub.f32 %v2057, %v2058
      %v2060 = vand.u32 %v2059, 4294901760
      %2061 = vmatmul.f32.gmra.mxu0 %v2060
      %v2062 = vpop.f32.mrf.mxu0
      %v2063 = vadd.f32 0.0, %v2062
      %v2064 = vand.u32 %v326, 4294901760
      %v2065 = vsub.f32 %v326, %v2064
      %v2066 = vand.u32 %v2065, 4294901760
      %v2067 = vsub.f32 %v2065, %v2066
      %v2068 = vand.u32 %v2067, 4294901760
      %2069 = vmatmul.f32.gmra.mxu0 %v2068
      %v2070 = vpop.f32.mrf.mxu0
      %v2071 = vadd.f32 0.0, %v2070
      %v2072 = vand.u32 %v329, 4294901760
      %v2073 = vsub.f32 %v329, %v2072
      %v2074 = vand.u32 %v2073, 4294901760
      %v2075 = vsub.f32 %v2073, %v2074
      %v2076 = vand.u32 %v2075, 4294901760
      %2077 = vmatmul.f32.gmra.mxu0 %v2076
      %v2078 = vpop.f32.mrf.mxu0
      %v2079 = vadd.f32 0.0, %v2078
      %v2080 = vand.u32 %v332, 4294901760
      %v2081 = vsub.f32 %v332, %v2080
      %v2082 = vand.u32 %v2081, 4294901760
      %v2083 = vsub.f32 %v2081, %v2082
      %v2084 = vand.u32 %v2083, 4294901760
      %2085 = vmatmul.f32.gmra.mxu0 %v2084
      %v2086 = vpop.f32.mrf.mxu0
      %v2087 = vadd.f32 0.0, %v2086
      %v2088 = vand.u32 %v335, 4294901760
      %v2089 = vsub.f32 %v335, %v2088
      %v2090 = vand.u32 %v2089, 4294901760
      %v2091 = vsub.f32 %v2089, %v2090
      %v2092 = vand.u32 %v2091, 4294901760
      %2093 = vmatmul.f32.gmra.mxu0 %v2092
      %v2094 = vpop.f32.mrf.mxu0
      %v2095 = vadd.f32 0.0, %v2094
      %v2096 = vand.u32 %v338, 4294901760
      %v2097 = vsub.f32 %v338, %v2096
      %v2098 = vand.u32 %v2097, 4294901760
      %v2099 = vsub.f32 %v2097, %v2098
      %v2100 = vand.u32 %v2099, 4294901760
      %2101 = vmatmul.f32.gmra.mxu0 %v2100
      %v2102 = vpop.f32.mrf.mxu0
      %v2103 = vadd.f32 0.0, %v2102
      %v2104 = vand.u32 %v341, 4294901760
      %v2105 = vsub.f32 %v341, %v2104
      %v2106 = vand.u32 %v2105, 4294901760
      %v2107 = vsub.f32 %v2105, %v2106
      %v2108 = vand.u32 %v2107, 4294901760
      %2109 = vmatmul.f32.gmra.mxu0 %v2108
      %v2110 = vpop.f32.mrf.mxu0
      %v2111 = vadd.f32 0.0, %v2110
      %v2112 = vand.u32 %v344, 4294901760
      %v2113 = vsub.f32 %v344, %v2112
      %v2114 = vand.u32 %v2113, 4294901760
      %v2115 = vsub.f32 %v2113, %v2114
      %v2116 = vand.u32 %v2115, 4294901760
      %2117 = vmatmul.f32.gmra.mxu0 %v2116
      %v2118 = vpop.f32.mrf.mxu0
      %v2119 = vadd.f32 0.0, %v2118
      %v2120 = vand.u32 %v347, 4294901760
      %v2121 = vsub.f32 %v347, %v2120
      %v2122 = vand.u32 %v2121, 4294901760
      %v2123 = vsub.f32 %v2121, %v2122
      %v2124 = vand.u32 %v2123, 4294901760
      %2125 = vmatmul.f32.gmra.mxu0 %v2124
      %v2126 = vpop.f32.mrf.mxu0
      %v2127 = vadd.f32 0.0, %v2126
      %v2128 = vand.u32 %v350, 4294901760
      %v2129 = vsub.f32 %v350, %v2128
      %v2130 = vand.u32 %v2129, 4294901760
      %v2131 = vsub.f32 %v2129, %v2130
      %v2132 = vand.u32 %v2131, 4294901760
      %2133 = vmatmul.f32.gmra.mxu0 %v2132
      %v2134 = vpop.f32.mrf.mxu0
      %v2135 = vadd.f32 0.0, %v2134
      %v2136 = vand.u32 %v353, 4294901760
      %v2137 = vsub.f32 %v353, %v2136
      %v2138 = vand.u32 %v2137, 4294901760
      %v2139 = vsub.f32 %v2137, %v2138
      %v2140 = vand.u32 %v2139, 4294901760
      %2141 = vmatmul.f32.gmra.mxu0 %v2140
      %v2142 = vpop.f32.mrf.mxu0
      %v2143 = vadd.f32 0.0, %v2142
      %v2144 = vand.u32 %v356, 4294901760
      %v2145 = vsub.f32 %v356, %v2144
      %v2146 = vand.u32 %v2145, 4294901760
      %v2147 = vsub.f32 %v2145, %v2146
      %v2148 = vand.u32 %v2147, 4294901760
      %2149 = vmatmul.f32.gmra.mxu0 %v2148
      %v2150 = vpop.f32.mrf.mxu0
      %v2151 = vadd.f32 0.0, %v2150
      %v2152 = vand.u32 %v359, 4294901760
      %v2153 = vsub.f32 %v359, %v2152
      %v2154 = vand.u32 %v2153, 4294901760
      %v2155 = vsub.f32 %v2153, %v2154
      %v2156 = vand.u32 %v2155, 4294901760
      %2157 = vmatmul.f32.gmra.mxu0 %v2156
      %v2158 = vpop.f32.mrf.mxu0
      %v2159 = vadd.f32 0.0, %v2158
      %v2160 = vand.u32 %v362, 4294901760
      %v2161 = vsub.f32 %v362, %v2160
      %v2162 = vand.u32 %v2161, 4294901760
      %v2163 = vsub.f32 %v2161, %v2162
      %v2164 = vand.u32 %v2163, 4294901760
      %2165 = vmatmul.f32.gmra.mxu0 %v2164
      %v2166 = vpop.f32.mrf.mxu0
      %v2167 = vadd.f32 0.0, %v2166
      %v2168 = vand.u32 %v365, 4294901760
      %v2169 = vsub.f32 %v365, %v2168
      %v2170 = vand.u32 %v2169, 4294901760
      %v2171 = vsub.f32 %v2169, %v2170
      %v2172 = vand.u32 %v2171, 4294901760
      %2173 = vmatmul.f32.gmra.mxu0 %v2172
      %v2174 = vpop.f32.mrf.mxu0
      %v2175 = vadd.f32 0.0, %v2174
      %v2176 = vand.u32 %v368, 4294901760
      %v2177 = vsub.f32 %v368, %v2176
      %v2178 = vand.u32 %v2177, 4294901760
      %v2179 = vsub.f32 %v2177, %v2178
      %v2180 = vand.u32 %v2179, 4294901760
      %2181 = vmatmul.f32.gmra.mxu0 %v2180
      %v2182 = vpop.f32.mrf.mxu0
      %v2183 = vadd.f32 0.0, %v2182
      %v2184 = vand.u32 %v371, 4294901760
      %v2185 = vsub.f32 %v371, %v2184
      %v2186 = vand.u32 %v2185, 4294901760
      %v2187 = vsub.f32 %v2185, %v2186
      %v2188 = vand.u32 %v2187, 4294901760
      %2189 = vmatmul.f32.gmra.mxu0 %v2188
      %v2190 = vpop.f32.mrf.mxu0
      %v2191 = vadd.f32 0.0, %v2190
      %2192 = vdwg.mxu0
      %2193 = vmatpush.msra.mxu0 0.0
      %2194 = vmatpush.msra.mxu0 0.0
      %2195 = vmatpush.msra.mxu0 0.0
      %2196 = vmatpush.msra.mxu0 0.0
      %2197 = vmatpush.msra.mxu0 0.0
      %2198 = vmatpush.msra.mxu0 0.0
      %2199 = vmatpush.msra.mxu0 0.0
      %2200 = vmatpush.msra.mxu0 0.0
      %2201 = vmatpush.msra.mxu0 0.0
      %v2202 = vand.u32 %v381, 4294901760
      %v2203 = vsub.f32 %v381, %v2202
      %v2204 = vand.u32 %v2203, 4294901760
      %v2205 = vsub.f32 %v2203, %v2204
      %v2206 = vand.u32 %v2205, 4294901760
      %2207 = vmatpush.msra.mxu0 %v2206
      %v2208 = vand.u32 %v308, 4294901760
      %v2209 = vsub.f32 %v308, %v2208
      %v2210 = vand.u32 %v2209, 4294901760
      %v2211 = vsub.f32 %v2209, %v2210
      %v2212 = vand.u32 %v2211, 4294901760
      %2213 = vmatpush.msra.mxu0 %v2212
      %v2214 = vand.u32 %v305, 4294901760
      %v2215 = vsub.f32 %v305, %v2214
      %v2216 = vand.u32 %v2215, 4294901760
      %v2217 = vsub.f32 %v2215, %v2216
      %v2218 = vand.u32 %v2217, 4294901760
      %2219 = vmatpush.msra.mxu0 %v2218
      %v2220 = vand.u32 %v302, 4294901760
      %v2221 = vsub.f32 %v302, %v2220
      %v2222 = vand.u32 %v2221, 4294901760
      %v2223 = vsub.f32 %v2221, %v2222
      %v2224 = vand.u32 %v2223, 4294901760
      %2225 = vmatpush.msra.mxu0 %v2224
      %v2226 = vand.u32 %v299, 4294901760
      %v2227 = vsub.f32 %v299, %v2226
      %v2228 = vand.u32 %v2227, 4294901760
      %v2229 = vsub.f32 %v2227, %v2228
      %v2230 = vand.u32 %v2229, 4294901760
      %2231 = vmatpush.msra.mxu0 %v2230
      %v2232 = vand.u32 %v296, 4294901760
      %v2233 = vsub.f32 %v296, %v2232
      %v2234 = vand.u32 %v2233, 4294901760
      %v2235 = vsub.f32 %v2233, %v2234
      %v2236 = vand.u32 %v2235, 4294901760
      %2237 = vmatpush.msra.mxu0 %v2236
      %v2238 = vand.u32 %v293, 4294901760
      %v2239 = vsub.f32 %v293, %v2238
      %v2240 = vand.u32 %v2239, 4294901760
      %v2241 = vsub.f32 %v2239, %v2240
      %v2242 = vand.u32 %v2241, 4294901760
      %2243 = vmatpush.msra.mxu0 %v2242
      %v2244 = vand.u32 %v314, 4294901760
      %2245 = vmatmul.f32.gmra.mxu0 %v2244
      %v2246 = vpop.f32.mrf.mxu0
      %v2247 = vadd.f32 %v2039, %v2246
      %v2248 = vand.u32 %v317, 4294901760
      %2249 = vmatmul.f32.gmra.mxu0 %v2248
      %v2250 = vpop.f32.mrf.mxu0
      %v2251 = vadd.f32 %v2047, %v2250
      %v2252 = vand.u32 %v320, 4294901760
      %2253 = vmatmul.f32.gmra.mxu0 %v2252
      %v2254 = vpop.f32.mrf.mxu0
      %v2255 = vadd.f32 %v2055, %v2254
      %v2256 = vand.u32 %v323, 4294901760
      %2257 = vmatmul.f32.gmra.mxu0 %v2256
      %v2258 = vpop.f32.mrf.mxu0
      %v2259 = vadd.f32 %v2063, %v2258
      %v2260 = vand.u32 %v326, 4294901760
      %2261 = vmatmul.f32.gmra.mxu0 %v2260
      %v2262 = vpop.f32.mrf.mxu0
      %v2263 = vadd.f32 %v2071, %v2262
      %v2264 = vand.u32 %v329, 4294901760
      %2265 = vmatmul.f32.gmra.mxu0 %v2264
      %v2266 = vpop.f32.mrf.mxu0
      %v2267 = vadd.f32 %v2079, %v2266
      %v2268 = vand.u32 %v332, 4294901760
      %2269 = vmatmul.f32.gmra.mxu0 %v2268
      %v2270 = vpop.f32.mrf.mxu0
      %v2271 = vadd.f32 %v2087, %v2270
      %v2272 = vand.u32 %v335, 4294901760
      %2273 = vmatmul.f32.gmra.mxu0 %v2272
      %v2274 = vpop.f32.mrf.mxu0
      %v2275 = vadd.f32 %v2095, %v2274
      %v2276 = vand.u32 %v338, 4294901760
      %2277 = vmatmul.f32.gmra.mxu0 %v2276
      %v2278 = vpop.f32.mrf.mxu0
      %v2279 = vadd.f32 %v2103, %v2278
      %v2280 = vand.u32 %v341, 4294901760
      %2281 = vmatmul.f32.gmra.mxu0 %v2280
      %v2282 = vpop.f32.mrf.mxu0
      %v2283 = vadd.f32 %v2111, %v2282
      %v2284 = vand.u32 %v344, 4294901760
      %2285 = vmatmul.f32.gmra.mxu0 %v2284
      %v2286 = vpop.f32.mrf.mxu0
      %v2287 = vadd.f32 %v2119, %v2286
      %v2288 = vand.u32 %v347, 4294901760
      %2289 = vmatmul.f32.gmra.mxu0 %v2288
      %v2290 = vpop.f32.mrf.mxu0
      %v2291 = vadd.f32 %v2127, %v2290
      %v2292 = vand.u32 %v350, 4294901760
      %2293 = vmatmul.f32.gmra.mxu0 %v2292
      %v2294 = vpop.f32.mrf.mxu0
      %v2295 = vadd.f32 %v2135, %v2294
      %v2296 = vand.u32 %v353, 4294901760
      %2297 = vmatmul.f32.gmra.mxu0 %v2296
      %v2298 = vpop.f32.mrf.mxu0
      %v2299 = vadd.f32 %v2143, %v2298
      %v2300 = vand.u32 %v356, 4294901760
      %2301 = vmatmul.f32.gmra.mxu0 %v2300
      %v2302 = vpop.f32.mrf.mxu0
      %v2303 = vadd.f32 %v2151, %v2302
      %v2304 = vand.u32 %v359, 4294901760
      %2305 = vmatmul.f32.gmra.mxu0 %v2304
      %v2306 = vpop.f32.mrf.mxu0
      %v2307 = vadd.f32 %v2159, %v2306
      %v2308 = vand.u32 %v362, 4294901760
      %2309 = vmatmul.f32.gmra.mxu0 %v2308
      %v2310 = vpop.f32.mrf.mxu0
      %v2311 = vadd.f32 %v2167, %v2310
      %v2312 = vand.u32 %v365, 4294901760
      %2313 = vmatmul.f32.gmra.mxu0 %v2312
      %v2314 = vpop.f32.mrf.mxu0
      %v2315 = vadd.f32 %v2175, %v2314
      %v2316 = vand.u32 %v368, 4294901760
      %2317 = vmatmul.f32.gmra.mxu0 %v2316
      %v2318 = vpop.f32.mrf.mxu0
      %v2319 = vadd.f32 %v2183, %v2318
      %v2320 = vand.u32 %v371, 4294901760
      %2321 = vmatmul.f32.gmra.mxu0 %v2320
      %v2322 = vpop.f32.mrf.mxu0
      %v2323 = vadd.f32 %v2191, %v2322
      %2324 = vdwg.mxu0
      %2325 = vmatpush.msra.mxu0 0.0
      %2326 = vmatpush.msra.mxu0 0.0
      %2327 = vmatpush.msra.mxu0 0.0
      %2328 = vmatpush.msra.mxu0 0.0
      %2329 = vmatpush.msra.mxu0 0.0
      %2330 = vmatpush.msra.mxu0 0.0
      %2331 = vmatpush.msra.mxu0 0.0
      %2332 = vmatpush.msra.mxu0 0.0
      %2333 = vmatpush.msra.mxu0 0.0
      %v2334 = vand.u32 %v381, 4294901760
      %v2335 = vsub.f32 %v381, %v2334
      %2336 = vmatpush.msra.mxu0 %v2335
      %v2337 = vand.u32 %v308, 4294901760
      %v2338 = vsub.f32 %v308, %v2337
      %2339 = vmatpush.msra.mxu0 %v2338
      %v2340 = vand.u32 %v305, 4294901760
      %v2341 = vsub.f32 %v305, %v2340
      %2342 = vmatpush.msra.mxu0 %v2341
      %v2343 = vand.u32 %v302, 4294901760
      %v2344 = vsub.f32 %v302, %v2343
      %2345 = vmatpush.msra.mxu0 %v2344
      %v2346 = vand.u32 %v299, 4294901760
      %v2347 = vsub.f32 %v299, %v2346
      %2348 = vmatpush.msra.mxu0 %v2347
      %v2349 = vand.u32 %v296, 4294901760
      %v2350 = vsub.f32 %v296, %v2349
      %2351 = vmatpush.msra.mxu0 %v2350
      %v2352 = vand.u32 %v293, 4294901760
      %v2353 = vsub.f32 %v293, %v2352
      %2354 = vmatpush.msra.mxu0 %v2353
      %v2355 = vand.u32 %v314, 4294901760
      %v2356 = vsub.f32 %v314, %v2355
      %2357 = vmatmul.f32.gmra.mxu0 %v2356
      %v2358 = vpop.f32.mrf.mxu0
      %v2359 = vadd.f32 %v2247, %v2358
      %v2360 = vand.u32 %v317, 4294901760
      %v2361 = vsub.f32 %v317, %v2360
      %2362 = vmatmul.f32.gmra.mxu0 %v2361
      %v2363 = vpop.f32.mrf.mxu0
      %v2364 = vadd.f32 %v2251, %v2363
      %v2365 = vand.u32 %v320, 4294901760
      %v2366 = vsub.f32 %v320, %v2365
      %2367 = vmatmul.f32.gmra.mxu0 %v2366
      %v2368 = vpop.f32.mrf.mxu0
      %v2369 = vadd.f32 %v2255, %v2368
      %v2370 = vand.u32 %v323, 4294901760
      %v2371 = vsub.f32 %v323, %v2370
      %2372 = vmatmul.f32.gmra.mxu0 %v2371
      %v2373 = vpop.f32.mrf.mxu0
      %v2374 = vadd.f32 %v2259, %v2373
      %v2375 = vand.u32 %v326, 4294901760
      %v2376 = vsub.f32 %v326, %v2375
      %2377 = vmatmul.f32.gmra.mxu0 %v2376
      %v2378 = vpop.f32.mrf.mxu0
      %v2379 = vadd.f32 %v2263, %v2378
      %v2380 = vand.u32 %v329, 4294901760
      %v2381 = vsub.f32 %v329, %v2380
      %2382 = vmatmul.f32.gmra.mxu0 %v2381
      %v2383 = vpop.f32.mrf.mxu0
      %v2384 = vadd.f32 %v2267, %v2383
      %v2385 = vand.u32 %v332, 4294901760
      %v2386 = vsub.f32 %v332, %v2385
      %2387 = vmatmul.f32.gmra.mxu0 %v2386
      %v2388 = vpop.f32.mrf.mxu0
      %v2389 = vadd.f32 %v2271, %v2388
      %v2390 = vand.u32 %v335, 4294901760
      %v2391 = vsub.f32 %v335, %v2390
      %2392 = vmatmul.f32.gmra.mxu0 %v2391
      %v2393 = vpop.f32.mrf.mxu0
      %v2394 = vadd.f32 %v2275, %v2393
      %v2395 = vand.u32 %v338, 4294901760
      %v2396 = vsub.f32 %v338, %v2395
      %2397 = vmatmul.f32.gmra.mxu0 %v2396
      %v2398 = vpop.f32.mrf.mxu0
      %v2399 = vadd.f32 %v2279, %v2398
      %v2400 = vand.u32 %v341, 4294901760
      %v2401 = vsub.f32 %v341, %v2400
      %2402 = vmatmul.f32.gmra.mxu0 %v2401
      %v2403 = vpop.f32.mrf.mxu0
      %v2404 = vadd.f32 %v2283, %v2403
      %v2405 = vand.u32 %v344, 4294901760
      %v2406 = vsub.f32 %v344, %v2405
      %2407 = vmatmul.f32.gmra.mxu0 %v2406
      %v2408 = vpop.f32.mrf.mxu0
      %v2409 = vadd.f32 %v2287, %v2408
      %v2410 = vand.u32 %v347, 4294901760
      %v2411 = vsub.f32 %v347, %v2410
      %2412 = vmatmul.f32.gmra.mxu0 %v2411
      %v2413 = vpop.f32.mrf.mxu0
      %v2414 = vadd.f32 %v2291, %v2413
      %v2415 = vand.u32 %v350, 4294901760
      %v2416 = vsub.f32 %v350, %v2415
      %2417 = vmatmul.f32.gmra.mxu0 %v2416
      %v2418 = vpop.f32.mrf.mxu0
      %v2419 = vadd.f32 %v2295, %v2418
      %v2420 = vand.u32 %v353, 4294901760
      %v2421 = vsub.f32 %v353, %v2420
      %2422 = vmatmul.f32.gmra.mxu0 %v2421
      %v2423 = vpop.f32.mrf.mxu0
      %v2424 = vadd.f32 %v2299, %v2423
      %v2425 = vand.u32 %v356, 4294901760
      %v2426 = vsub.f32 %v356, %v2425
      %2427 = vmatmul.f32.gmra.mxu0 %v2426
      %v2428 = vpop.f32.mrf.mxu0
      %v2429 = vadd.f32 %v2303, %v2428
      %v2430 = vand.u32 %v359, 4294901760
      %v2431 = vsub.f32 %v359, %v2430
      %2432 = vmatmul.f32.gmra.mxu0 %v2431
      %v2433 = vpop.f32.mrf.mxu0
      %v2434 = vadd.f32 %v2307, %v2433
      %v2435 = vand.u32 %v362, 4294901760
      %v2436 = vsub.f32 %v362, %v2435
      %2437 = vmatmul.f32.gmra.mxu0 %v2436
      %v2438 = vpop.f32.mrf.mxu0
      %v2439 = vadd.f32 %v2311, %v2438
      %v2440 = vand.u32 %v365, 4294901760
      %v2441 = vsub.f32 %v365, %v2440
      %2442 = vmatmul.f32.gmra.mxu0 %v2441
      %v2443 = vpop.f32.mrf.mxu0
      %v2444 = vadd.f32 %v2315, %v2443
      %v2445 = vand.u32 %v368, 4294901760
      %v2446 = vsub.f32 %v368, %v2445
      %2447 = vmatmul.f32.gmra.mxu0 %v2446
      %v2448 = vpop.f32.mrf.mxu0
      %v2449 = vadd.f32 %v2319, %v2448
      %v2450 = vand.u32 %v371, 4294901760
      %v2451 = vsub.f32 %v371, %v2450
      %2452 = vmatmul.f32.gmra.mxu0 %v2451
      %v2453 = vpop.f32.mrf.mxu0
      %v2454 = vadd.f32 %v2323, %v2453
      %2455 = vdwg.mxu0
      %2456 = vmatpush.msra.mxu0 0.0
      %2457 = vmatpush.msra.mxu0 0.0
      %2458 = vmatpush.msra.mxu0 0.0
      %2459 = vmatpush.msra.mxu0 0.0
      %2460 = vmatpush.msra.mxu0 0.0
      %2461 = vmatpush.msra.mxu0 0.0
      %2462 = vmatpush.msra.mxu0 0.0
      %2463 = vmatpush.msra.mxu0 0.0
      %2464 = vmatpush.msra.mxu0 0.0
      %v2465 = vand.u32 %v381, 4294901760
      %2466 = vmatpush.msra.mxu0 %v2465
      %v2467 = vand.u32 %v308, 4294901760
      %2468 = vmatpush.msra.mxu0 %v2467
      %v2469 = vand.u32 %v305, 4294901760
      %2470 = vmatpush.msra.mxu0 %v2469
      %v2471 = vand.u32 %v302, 4294901760
      %2472 = vmatpush.msra.mxu0 %v2471
      %v2473 = vand.u32 %v299, 4294901760
      %2474 = vmatpush.msra.mxu0 %v2473
      %v2475 = vand.u32 %v296, 4294901760
      %2476 = vmatpush.msra.mxu0 %v2475
      %v2477 = vand.u32 %v293, 4294901760
      %2478 = vmatpush.msra.mxu0 %v2477
      %v2479 = vand.u32 %v314, 4294901760
      %v2480 = vsub.f32 %v314, %v2479
      %v2481 = vand.u32 %v2480, 4294901760
      %2482 = vmatmul.f32.gmra.mxu0 %v2481
      %v2483 = vpop.f32.mrf.mxu0
      %v2484 = vadd.f32 %v2359, %v2483
      %v2485 = vand.u32 %v317, 4294901760
      %v2486 = vsub.f32 %v317, %v2485
      %v2487 = vand.u32 %v2486, 4294901760
      %2488 = vmatmul.f32.gmra.mxu0 %v2487
      %v2489 = vpop.f32.mrf.mxu0
      %v2490 = vadd.f32 %v2364, %v2489
      %v2491 = vand.u32 %v320, 4294901760
      %v2492 = vsub.f32 %v320, %v2491
      %v2493 = vand.u32 %v2492, 4294901760
      %2494 = vmatmul.f32.gmra.mxu0 %v2493
      %v2495 = vpop.f32.mrf.mxu0
      %v2496 = vadd.f32 %v2369, %v2495
      %v2497 = vand.u32 %v323, 4294901760
      %v2498 = vsub.f32 %v323, %v2497
      %v2499 = vand.u32 %v2498, 4294901760
      %2500 = vmatmul.f32.gmra.mxu0 %v2499
      %v2501 = vpop.f32.mrf.mxu0
      %v2502 = vadd.f32 %v2374, %v2501
      %v2503 = vand.u32 %v326, 4294901760
      %v2504 = vsub.f32 %v326, %v2503
      %v2505 = vand.u32 %v2504, 4294901760
      %2506 = vmatmul.f32.gmra.mxu0 %v2505
      %v2507 = vpop.f32.mrf.mxu0
      %v2508 = vadd.f32 %v2379, %v2507
      %v2509 = vand.u32 %v329, 4294901760
      %v2510 = vsub.f32 %v329, %v2509
      %v2511 = vand.u32 %v2510, 4294901760
      %2512 = vmatmul.f32.gmra.mxu0 %v2511
      %v2513 = vpop.f32.mrf.mxu0
      %v2514 = vadd.f32 %v2384, %v2513
      %v2515 = vand.u32 %v332, 4294901760
      %v2516 = vsub.f32 %v332, %v2515
      %v2517 = vand.u32 %v2516, 4294901760
      %2518 = vmatmul.f32.gmra.mxu0 %v2517
      %v2519 = vpop.f32.mrf.mxu0
      %v2520 = vadd.f32 %v2389, %v2519
      %v2521 = vand.u32 %v335, 4294901760
      %v2522 = vsub.f32 %v335, %v2521
      %v2523 = vand.u32 %v2522, 4294901760
      %2524 = vmatmul.f32.gmra.mxu0 %v2523
      %v2525 = vpop.f32.mrf.mxu0
      %v2526 = vadd.f32 %v2394, %v2525
      %v2527 = vand.u32 %v338, 4294901760
      %v2528 = vsub.f32 %v338, %v2527
      %v2529 = vand.u32 %v2528, 4294901760
      %2530 = vmatmul.f32.gmra.mxu0 %v2529
      %v2531 = vpop.f32.mrf.mxu0
      %v2532 = vadd.f32 %v2399, %v2531
      %v2533 = vand.u32 %v341, 4294901760
      %v2534 = vsub.f32 %v341, %v2533
      %v2535 = vand.u32 %v2534, 4294901760
      %2536 = vmatmul.f32.gmra.mxu0 %v2535
      %v2537 = vpop.f32.mrf.mxu0
      %v2538 = vadd.f32 %v2404, %v2537
      %v2539 = vand.u32 %v344, 4294901760
      %v2540 = vsub.f32 %v344, %v2539
      %v2541 = vand.u32 %v2540, 4294901760
      %2542 = vmatmul.f32.gmra.mxu0 %v2541
      %v2543 = vpop.f32.mrf.mxu0
      %v2544 = vadd.f32 %v2409, %v2543
      %v2545 = vand.u32 %v347, 4294901760
      %v2546 = vsub.f32 %v347, %v2545
      %v2547 = vand.u32 %v2546, 4294901760
      %2548 = vmatmul.f32.gmra.mxu0 %v2547
      %v2549 = vpop.f32.mrf.mxu0
      %v2550 = vadd.f32 %v2414, %v2549
      %v2551 = vand.u32 %v350, 4294901760
      %v2552 = vsub.f32 %v350, %v2551
      %v2553 = vand.u32 %v2552, 4294901760
      %2554 = vmatmul.f32.gmra.mxu0 %v2553
      %v2555 = vpop.f32.mrf.mxu0
      %v2556 = vadd.f32 %v2419, %v2555
      %v2557 = vand.u32 %v353, 4294901760
      %v2558 = vsub.f32 %v353, %v2557
      %v2559 = vand.u32 %v2558, 4294901760
      %2560 = vmatmul.f32.gmra.mxu0 %v2559
      %v2561 = vpop.f32.mrf.mxu0
      %v2562 = vadd.f32 %v2424, %v2561
      %v2563 = vand.u32 %v356, 4294901760
      %v2564 = vsub.f32 %v356, %v2563
      %v2565 = vand.u32 %v2564, 4294901760
      %2566 = vmatmul.f32.gmra.mxu0 %v2565
      %v2567 = vpop.f32.mrf.mxu0
      %v2568 = vadd.f32 %v2429, %v2567
      %v2569 = vand.u32 %v359, 4294901760
      %v2570 = vsub.f32 %v359, %v2569
      %v2571 = vand.u32 %v2570, 4294901760
      %2572 = vmatmul.f32.gmra.mxu0 %v2571
      %v2573 = vpop.f32.mrf.mxu0
      %v2574 = vadd.f32 %v2434, %v2573
      %v2575 = vand.u32 %v362, 4294901760
      %v2576 = vsub.f32 %v362, %v2575
      %v2577 = vand.u32 %v2576, 4294901760
      %2578 = vmatmul.f32.gmra.mxu0 %v2577
      %v2579 = vpop.f32.mrf.mxu0
      %v2580 = vadd.f32 %v2439, %v2579
      %v2581 = vand.u32 %v365, 4294901760
      %v2582 = vsub.f32 %v365, %v2581
      %v2583 = vand.u32 %v2582, 4294901760
      %2584 = vmatmul.f32.gmra.mxu0 %v2583
      %v2585 = vpop.f32.mrf.mxu0
      %v2586 = vadd.f32 %v2444, %v2585
      %v2587 = vand.u32 %v368, 4294901760
      %v2588 = vsub.f32 %v368, %v2587
      %v2589 = vand.u32 %v2588, 4294901760
      %2590 = vmatmul.f32.gmra.mxu0 %v2589
      %v2591 = vpop.f32.mrf.mxu0
      %v2592 = vadd.f32 %v2449, %v2591
      %v2593 = vand.u32 %v371, 4294901760
      %v2594 = vsub.f32 %v371, %v2593
      %v2595 = vand.u32 %v2594, 4294901760
      %2596 = vmatmul.f32.gmra.mxu0 %v2595
      %v2597 = vpop.f32.mrf.mxu0
      %v2598 = vadd.f32 %v2454, %v2597
      %2599 = vdwg.mxu0
      %2600 = vmatpush.msra.mxu0 0.0
      %2601 = vmatpush.msra.mxu0 0.0
      %2602 = vmatpush.msra.mxu0 0.0
      %2603 = vmatpush.msra.mxu0 0.0
      %2604 = vmatpush.msra.mxu0 0.0
      %2605 = vmatpush.msra.mxu0 0.0
      %2606 = vmatpush.msra.mxu0 0.0
      %2607 = vmatpush.msra.mxu0 0.0
      %2608 = vmatpush.msra.mxu0 0.0
      %v2609 = vand.u32 %v381, 4294901760
      %v2610 = vsub.f32 %v381, %v2609
      %v2611 = vand.u32 %v2610, 4294901760
      %2612 = vmatpush.msra.mxu0 %v2611
      %v2613 = vand.u32 %v308, 4294901760
      %v2614 = vsub.f32 %v308, %v2613
      %v2615 = vand.u32 %v2614, 4294901760
      %2616 = vmatpush.msra.mxu0 %v2615
      %v2617 = vand.u32 %v305, 4294901760
      %v2618 = vsub.f32 %v305, %v2617
      %v2619 = vand.u32 %v2618, 4294901760
      %2620 = vmatpush.msra.mxu0 %v2619
      %v2621 = vand.u32 %v302, 4294901760
      %v2622 = vsub.f32 %v302, %v2621
      %v2623 = vand.u32 %v2622, 4294901760
      %2624 = vmatpush.msra.mxu0 %v2623
      %v2625 = vand.u32 %v299, 4294901760
      %v2626 = vsub.f32 %v299, %v2625
      %v2627 = vand.u32 %v2626, 4294901760
      %2628 = vmatpush.msra.mxu0 %v2627
      %v2629 = vand.u32 %v296, 4294901760
      %v2630 = vsub.f32 %v296, %v2629
      %v2631 = vand.u32 %v2630, 4294901760
      %2632 = vmatpush.msra.mxu0 %v2631
      %v2633 = vand.u32 %v293, 4294901760
      %v2634 = vsub.f32 %v293, %v2633
      %v2635 = vand.u32 %v2634, 4294901760
      %2636 = vmatpush.msra.mxu0 %v2635
      %v2637 = vand.u32 %v314, 4294901760
      %2638 = vmatmul.f32.gmra.mxu0 %v2637
      %v2639 = vpop.f32.mrf.mxu0
      %v2640 = vadd.f32 %v2484, %v2639
      %v2641 = vand.u32 %v317, 4294901760
      %2642 = vmatmul.f32.gmra.mxu0 %v2641
      %v2643 = vpop.f32.mrf.mxu0
      %v2644 = vadd.f32 %v2490, %v2643
      %v2645 = vand.u32 %v320, 4294901760
      %2646 = vmatmul.f32.gmra.mxu0 %v2645
      %v2647 = vpop.f32.mrf.mxu0
      %v2648 = vadd.f32 %v2496, %v2647
      %v2649 = vand.u32 %v323, 4294901760
      %2650 = vmatmul.f32.gmra.mxu0 %v2649
      %v2651 = vpop.f32.mrf.mxu0
      %v2652 = vadd.f32 %v2502, %v2651
      %v2653 = vand.u32 %v326, 4294901760
      %2654 = vmatmul.f32.gmra.mxu0 %v2653
      %v2655 = vpop.f32.mrf.mxu0
      %v2656 = vadd.f32 %v2508, %v2655
      %v2657 = vand.u32 %v329, 4294901760
      %2658 = vmatmul.f32.gmra.mxu0 %v2657
      %v2659 = vpop.f32.mrf.mxu0
      %v2660 = vadd.f32 %v2514, %v2659
      %v2661 = vand.u32 %v332, 4294901760
      %2662 = vmatmul.f32.gmra.mxu0 %v2661
      %v2663 = vpop.f32.mrf.mxu0
      %v2664 = vadd.f32 %v2520, %v2663
      %v2665 = vand.u32 %v335, 4294901760
      %2666 = vmatmul.f32.gmra.mxu0 %v2665
      %v2667 = vpop.f32.mrf.mxu0
      %v2668 = vadd.f32 %v2526, %v2667
      %v2669 = vand.u32 %v338, 4294901760
      %2670 = vmatmul.f32.gmra.mxu0 %v2669
      %v2671 = vpop.f32.mrf.mxu0
      %v2672 = vadd.f32 %v2532, %v2671
      %v2673 = vand.u32 %v341, 4294901760
      %2674 = vmatmul.f32.gmra.mxu0 %v2673
      %v2675 = vpop.f32.mrf.mxu0
      %v2676 = vadd.f32 %v2538, %v2675
      %v2677 = vand.u32 %v344, 4294901760
      %2678 = vmatmul.f32.gmra.mxu0 %v2677
      %v2679 = vpop.f32.mrf.mxu0
      %v2680 = vadd.f32 %v2544, %v2679
      %v2681 = vand.u32 %v347, 4294901760
      %2682 = vmatmul.f32.gmra.mxu0 %v2681
      %v2683 = vpop.f32.mrf.mxu0
      %v2684 = vadd.f32 %v2550, %v2683
      %v2685 = vand.u32 %v350, 4294901760
      %2686 = vmatmul.f32.gmra.mxu0 %v2685
      %v2687 = vpop.f32.mrf.mxu0
      %v2688 = vadd.f32 %v2556, %v2687
      %v2689 = vand.u32 %v353, 4294901760
      %2690 = vmatmul.f32.gmra.mxu0 %v2689
      %v2691 = vpop.f32.mrf.mxu0
      %v2692 = vadd.f32 %v2562, %v2691
      %v2693 = vand.u32 %v356, 4294901760
      %2694 = vmatmul.f32.gmra.mxu0 %v2693
      %v2695 = vpop.f32.mrf.mxu0
      %v2696 = vadd.f32 %v2568, %v2695
      %v2697 = vand.u32 %v359, 4294901760
      %2698 = vmatmul.f32.gmra.mxu0 %v2697
      %v2699 = vpop.f32.mrf.mxu0
      %v2700 = vadd.f32 %v2574, %v2699
      %v2701 = vand.u32 %v362, 4294901760
      %2702 = vmatmul.f32.gmra.mxu0 %v2701
      %v2703 = vpop.f32.mrf.mxu0
      %v2704 = vadd.f32 %v2580, %v2703
      %v2705 = vand.u32 %v365, 4294901760
      %2706 = vmatmul.f32.gmra.mxu0 %v2705
      %v2707 = vpop.f32.mrf.mxu0
      %v2708 = vadd.f32 %v2586, %v2707
      %v2709 = vand.u32 %v368, 4294901760
      %2710 = vmatmul.f32.gmra.mxu0 %v2709
      %v2711 = vpop.f32.mrf.mxu0
      %v2712 = vadd.f32 %v2592, %v2711
      %v2713 = vand.u32 %v371, 4294901760
      %2714 = vmatmul.f32.gmra.mxu0 %v2713
      %v2715 = vpop.f32.mrf.mxu0
      %v2716 = vadd.f32 %v2598, %v2715
      %2717 = vdwg.mxu0
      %2718 = vmatpush.msra.mxu0 0.0
      %2719 = vmatpush.msra.mxu0 0.0
      %2720 = vmatpush.msra.mxu0 0.0
      %2721 = vmatpush.msra.mxu0 0.0
      %2722 = vmatpush.msra.mxu0 0.0
      %2723 = vmatpush.msra.mxu0 0.0
      %2724 = vmatpush.msra.mxu0 0.0
      %2725 = vmatpush.msra.mxu0 0.0
      %2726 = vmatpush.msra.mxu0 0.0
      %v2727 = vand.u32 %v381, 4294901760
      %2728 = vmatpush.msra.mxu0 %v2727
      %v2729 = vand.u32 %v308, 4294901760
      %2730 = vmatpush.msra.mxu0 %v2729
      %v2731 = vand.u32 %v305, 4294901760
      %2732 = vmatpush.msra.mxu0 %v2731
      %v2733 = vand.u32 %v302, 4294901760
      %2734 = vmatpush.msra.mxu0 %v2733
      %v2735 = vand.u32 %v299, 4294901760
      %2736 = vmatpush.msra.mxu0 %v2735
      %v2737 = vand.u32 %v296, 4294901760
      %2738 = vmatpush.msra.mxu0 %v2737
      %v2739 = vand.u32 %v293, 4294901760
      %2740 = vmatpush.msra.mxu0 %v2739
      %v2741 = vand.u32 %v314, 4294901760
      %2742 = vmatmul.f32.gmra.mxu0 %v2741
      %v2743 = vpop.f32.mrf.mxu0
      %v2744 = vadd.f32 %v2640, %v2743
      %v2745 = vand.u32 %v317, 4294901760
      %2746 = vmatmul.f32.gmra.mxu0 %v2745
      %v2747 = vpop.f32.mrf.mxu0
      %v2748 = vadd.f32 %v2644, %v2747
      %v2749 = vand.u32 %v320, 4294901760
      %2750 = vmatmul.f32.gmra.mxu0 %v2749
      %v2751 = vpop.f32.mrf.mxu0
      %v2752 = vadd.f32 %v2648, %v2751
      %v2753 = vand.u32 %v323, 4294901760
      %2754 = vmatmul.f32.gmra.mxu0 %v2753
      %v2755 = vpop.f32.mrf.mxu0
      %v2756 = vadd.f32 %v2652, %v2755
      %v2757 = vand.u32 %v326, 4294901760
      %2758 = vmatmul.f32.gmra.mxu0 %v2757
      %v2759 = vpop.f32.mrf.mxu0
      %v2760 = vadd.f32 %v2656, %v2759
      %v2761 = vand.u32 %v329, 4294901760
      %2762 = vmatmul.f32.gmra.mxu0 %v2761
      %v2763 = vpop.f32.mrf.mxu0
      %v2764 = vadd.f32 %v2660, %v2763
      %v2765 = vand.u32 %v332, 4294901760
      %2766 = vmatmul.f32.gmra.mxu0 %v2765
      %v2767 = vpop.f32.mrf.mxu0
      %v2768 = vadd.f32 %v2664, %v2767
      %v2769 = vand.u32 %v335, 4294901760
      %2770 = vmatmul.f32.gmra.mxu0 %v2769
      %v2771 = vpop.f32.mrf.mxu0
      %v2772 = vadd.f32 %v2668, %v2771
      %v2773 = vand.u32 %v338, 4294901760
      %2774 = vmatmul.f32.gmra.mxu0 %v2773
      %v2775 = vpop.f32.mrf.mxu0
      %v2776 = vadd.f32 %v2672, %v2775
      %v2777 = vand.u32 %v341, 4294901760
      %2778 = vmatmul.f32.gmra.mxu0 %v2777
      %v2779 = vpop.f32.mrf.mxu0
      %v2780 = vadd.f32 %v2676, %v2779
      %v2781 = vand.u32 %v344, 4294901760
      %2782 = vmatmul.f32.gmra.mxu0 %v2781
      %v2783 = vpop.f32.mrf.mxu0
      %v2784 = vadd.f32 %v2680, %v2783
      %v2785 = vand.u32 %v347, 4294901760
      %2786 = vmatmul.f32.gmra.mxu0 %v2785
      %v2787 = vpop.f32.mrf.mxu0
      %v2788 = vadd.f32 %v2684, %v2787
      %v2789 = vand.u32 %v350, 4294901760
      %2790 = vmatmul.f32.gmra.mxu0 %v2789
      %v2791 = vpop.f32.mrf.mxu0
      %v2792 = vadd.f32 %v2688, %v2791
      %v2793 = vand.u32 %v353, 4294901760
      %2794 = vmatmul.f32.gmra.mxu0 %v2793
      %v2795 = vpop.f32.mrf.mxu0
      %v2796 = vadd.f32 %v2692, %v2795
      %v2797 = vand.u32 %v356, 4294901760
      %2798 = vmatmul.f32.gmra.mxu0 %v2797
      %v2799 = vpop.f32.mrf.mxu0
      %v2800 = vadd.f32 %v2696, %v2799
      %v2801 = vand.u32 %v359, 4294901760
      %2802 = vmatmul.f32.gmra.mxu0 %v2801
      %v2803 = vpop.f32.mrf.mxu0
      %v2804 = vadd.f32 %v2700, %v2803
      %v2805 = vand.u32 %v362, 4294901760
      %2806 = vmatmul.f32.gmra.mxu0 %v2805
      %v2807 = vpop.f32.mrf.mxu0
      %v2808 = vadd.f32 %v2704, %v2807
      %v2809 = vand.u32 %v365, 4294901760
      %2810 = vmatmul.f32.gmra.mxu0 %v2809
      %v2811 = vpop.f32.mrf.mxu0
      %v2812 = vadd.f32 %v2708, %v2811
      %v2813 = vand.u32 %v368, 4294901760
      %2814 = vmatmul.f32.gmra.mxu0 %v2813
      %v2815 = vpop.f32.mrf.mxu0
      %v2816 = vadd.f32 %v2712, %v2815
      %v2817 = vand.u32 %v371, 4294901760
      %2818 = vmatmul.f32.gmra.mxu0 %v2817
      %v2819 = vpop.f32.mrf.mxu0
      %v2820 = vadd.f32 %v2716, %v2819
      %2821 = vdwg.mxu0
      %2822 = vst [vmem:[%s147] sm:$0xff] %v1118
      %2823 = vst [vmem:[%s147 + $0x8] sm:$0xff] %v1931
      %vm2824 = vcmask 359424
      %2825 = vst.msk [vmem:[%s147 + $0x10] sm:$0xff] %vm2824, %v2744
      %2826 = vst [vmem:[%s147 + $0x18] sm:$0xff] %v1122
      %2827 = vst [vmem:[%s147 + $0x20] sm:$0xff] %v1935
      %2828 = vst.msk [vmem:[%s147 + $0x28] sm:$0xff] %vm2824, %v2748
      %2829 = vst [vmem:[%s147 + $0x30] sm:$0xff] %v1126
      %2830 = vst [vmem:[%s147 + $0x38] sm:$0xff] %v1939
      %2831 = vst.msk [vmem:[%s147 + $0x40] sm:$0xff] %vm2824, %v2752
      %2832 = vst [vmem:[%s147 + $0x48] sm:$0xff] %v1130
      %2833 = vst [vmem:[%s147 + $0x50] sm:$0xff] %v1943
      %2834 = vst.msk [vmem:[%s147 + $0x58] sm:$0xff] %vm2824, %v2756
      %2835 = vst [vmem:[%s147 + $0x60] sm:$0xff] %v1134
      %2836 = vst [vmem:[%s147 + $0x68] sm:$0xff] %v1947
      %2837 = vst.msk [vmem:[%s147 + $0x70] sm:$0xff] %vm2824, %v2760
      %2838 = vst [vmem:[%s147 + $0x78] sm:$0xff] %v1138
      %2839 = vst [vmem:[%s147 + $0x80] sm:$0xff] %v1951
      %2840 = vst.msk [vmem:[%s147 + $0x88] sm:$0xff] %vm2824, %v2764
      %2841 = vst [vmem:[%s147 + $0x90] sm:$0xff] %v1142
      %2842 = vst [vmem:[%s147 + $0x98] sm:$0xff] %v1955
      %2843 = vst.msk [vmem:[%s147 + $0xa0] sm:$0xff] %vm2824, %v2768
      %2844 = vst [vmem:[%s147 + $0xa8] sm:$0xff] %v1146
      %2845 = vst [vmem:[%s147 + $0xb0] sm:$0xff] %v1959
      %2846 = vst.msk [vmem:[%s147 + $0xb8] sm:$0xff] %vm2824, %v2772
      %2847 = vst [vmem:[%s147 + $0xc0] sm:$0xff] %v1150
      %2848 = vst [vmem:[%s147 + $0xc8] sm:$0xff] %v1963
      %2849 = vst.msk [vmem:[%s147 + $0xd0] sm:$0xff] %vm2824, %v2776
      %2850 = vst [vmem:[%s147 + $0xd8] sm:$0xff] %v1154
      %2851 = vst [vmem:[%s147 + $0xe0] sm:$0xff] %v1967
      %2852 = vst.msk [vmem:[%s147 + $0xe8] sm:$0xff] %vm2824, %v2780
      %2853 = vst [vmem:[%s147 + $0xf0] sm:$0xff] %v1158
      %2854 = vst [vmem:[%s147 + $0xf8] sm:$0xff] %v1971
      %2855 = vst.msk [vmem:[%s147 + $0x100] sm:$0xff] %vm2824, %v2784
      %2856 = vst [vmem:[%s147 + $0x108] sm:$0xff] %v1162
      %2857 = vst [vmem:[%s147 + $0x110] sm:$0xff] %v1975
      %2858 = vst.msk [vmem:[%s147 + $0x118] sm:$0xff] %vm2824, %v2788
      %2859 = vst [vmem:[%s147 + $0x120] sm:$0xff] %v1166
      %2860 = vst [vmem:[%s147 + $0x128] sm:$0xff] %v1979
      %2861 = vst.msk [vmem:[%s147 + $0x130] sm:$0xff] %vm2824, %v2792
      %2862 = vst [vmem:[%s147 + $0x138] sm:$0xff] %v1170
      %2863 = vst [vmem:[%s147 + $0x140] sm:$0xff] %v1983
      %2864 = vst.msk [vmem:[%s147 + $0x148] sm:$0xff] %vm2824, %v2796
      %2865 = vst [vmem:[%s147 + $0x150] sm:$0xff] %v1174
      %2866 = vst [vmem:[%s147 + $0x158] sm:$0xff] %v1987
      %2867 = vst.msk [vmem:[%s147 + $0x160] sm:$0xff] %vm2824, %v2800
      %2868 = vst [vmem:[%s147 + $0x168] sm:$0xff] %v1178
      %2869 = vst [vmem:[%s147 + $0x170] sm:$0xff] %v1991
      %2870 = vst.msk [vmem:[%s147 + $0x178] sm:$0xff] %vm2824, %v2804
      %2871 = vst [vmem:[%s147 + $0x180] sm:$0xff] %v1182
      %2872 = vst [vmem:[%s147 + $0x188] sm:$0xff] %v1995
      %2873 = vst.msk [vmem:[%s147 + $0x190] sm:$0xff] %vm2824, %v2808
      %2874 = vst [vmem:[%s147 + $0x198] sm:$0xff] %v1186
      %2875 = vst [vmem:[%s147 + $0x1a0] sm:$0xff] %v1999
      %2876 = vst.msk [vmem:[%s147 + $0x1a8] sm:$0xff] %vm2824, %v2812
      %2877 = vst [vmem:[%s147 + $0x1b0] sm:$0xff] %v1190
      %2878 = vst [vmem:[%s147 + $0x1b8] sm:$0xff] %v2003
      %2879 = vst.msk [vmem:[%s147 + $0x1c0] sm:$0xff] %vm2824, %v2816
      %2880 = vst [vmem:[%s147 + $0x1c8] sm:$0xff] %v1194
      %2881 = vst [vmem:[%s147 + $0x1d0] sm:$0xff] %v2007
      %2882 = vst.msk [vmem:[%s147 + $0x1d8] sm:$0xff] %vm2824, %v2820
      %s2883 = smul.u32 20, %s13
      %p2884 = scmp.lt.s32.totalorder %s2883, 39
      %s2885 = scalar_select %p2884, %s2883, 39
      %s2886 = smul.addr %s2885, 3
      %s2887 = smul.addr %s2886, 8
      %s2888 = scalar_lea.vmem %s2, %s2887
      // Predicated region
      $region29: #{tpu_custom_call.1} parent=27 // pred_check
        %p2889 = pneg %p78
      $region30: #{tpu_custom_call.1} parent=27 // pred_check_branch
        %2891 = sbr.rel (%p2889) target = $region32
      $region31: #{tpu_custom_call.1} parent=27 // pred_region
        %s2892 = smul.u32 20, %s13
      $region32: #{tpu_custom_call.1} parent=27 // pred_fallthru
        _
    $region28: #{tpu_custom_call.1} parent=5 // pred_fallthru
      _
    %p2893 = scmp.le.s32.totalorder 2, %s8
    // Predicated region
    $region33: #{tpu_custom_call.1} parent=5 // pred_check
      %p2894 = pneg %p2893
    $region34: #{tpu_custom_call.1} parent=5 // pred_check_branch
      %2896 = sbr.rel (%p2894) target = $region36
    $region35: #{tpu_custom_call.1} parent=5 // pred_region
      %s2897 = ssub.s32 %s8, 2
      // Predicated region
      $region37: #{tpu_custom_call.1} parent=35 // pred_check
        %p2898 = pneg %p84
      $region38: #{tpu_custom_call.1} parent=35 // pred_check_branch
        %2900 = sbr.rel (%p2898) target = $region40
      $region39: #{tpu_custom_call.1} parent=35 // pred_region
        %s2901 = smul.u32 20, %s14
        %p2902 = scmp.lt.s32.totalorder %s2901, 39
        %s2903 = scalar_select %p2902, %s2901, 39
        %s2904 = smul.addr %s2903, 3
        %s2905 = smul.addr %s2904, 8
        %s2906 = scalar_lea.vmem %s2, %s2905
      $region40: #{tpu_custom_call.1} parent=35 // pred_fallthru
        _
    $region36: #{tpu_custom_call.1} parent=5 // pred_fallthru
      _
  $region6: #{tpu_custom_call.1} parent=0 // loop_footer
    %s12 = sadd.s32 1, %s8
  $region7: #{tpu_custom_call.1} parent=0 // loop_footer_branch
    %7 = sbr.rel target = $region3
  $region8: #{tpu_custom_call.1} parent=0 // loop_exit
    _

</llo_original>
